<compile_context>
chip_gen: v7x
topology: tpu7x:2x2x1
jax: 0.10.0
libtpu: 0.0.40
codegen_flags: <defaults>
</compile_context>

<pallas_src>
from functools import partial

import numpy as np
import jax
import jax.numpy as jnp
from jax.experimental import pallas as pl
from jax.experimental.pallas import tpu as pltpu

NUM_FLOWS = 4
D = 8
DH = D // 2
M = 32                 # hidden width of the s/t MLPs
TWOM = 2 * M           # fused hidden width
B = 8                  # batch size for the demo
NEG_SLOPE = 0.01       # nn.LeakyReLU default
LANES = 128
MAX_BATCH_TILE = 512   # rows per grid step for large batches

# Per-flow slab layout (rows of a 128-lane f32 slab):
#   rows 0..DH-1   : fused layer-1 weight [W1s | W1t]              lanes 0:2M
#   row  DH (=4)   : fused layer-1 bias   [b1s | b1t]              lanes 0:2M
#   row  5         : fused layer-2 bias   [b2s | b2t]              lanes 0:2M
#   row  6         : fused layer-3 bias   [b3s | b3t]              lanes 0:2*DH
#   row  7         : padding
#   rows 8..8+2M-1 : block-diag layer-2 weight (2M x 2M)           lanes 0:2M
#                    block-diag layer-3 weight (2M x 2*DH)         lanes 2M:2M+2*DH
ROWS_PER_FLOW = 8 + TWOM                 # 72 (multiple of 8)
TOTAL_ROWS = NUM_FLOWS * ROWS_PER_FLOW   # 288
LOG2PI = float(np.log(2.0 * np.pi))


def _leaky_relu(x):
    return jnp.where(x > 0, x, NEG_SLOPE * x)


def realnvp_kernel(x_ref, w_ref, out_ref):
    x = x_ref[...]                       # (TB, D) f32
    a = x[:, 0:DH]                       # current "xa" half (up to a folded reversal)
    b = x[:, DH:D]                       # current "xb" half
    log_det = jnp.zeros((x.shape[0], 1), jnp.float32)

    for i in range(NUM_FLOWS):           # static unroll over flows
        base = i * ROWS_PER_FLOW

        # ---- fused s/t layer 1 on the VPU: K = DH = 4 broadcast MACs ----
        h = w_ref[base + DH:base + DH + 1, 0:TWOM]                   # b1, (1, 2M)
        for k in range(DH):
            h = h + a[:, k:k + 1] * w_ref[base + k:base + k + 1, 0:TWOM]
        h = _leaky_relu(h)                                           # (TB, 2M)

        # ---- fused layer 2: one block-diagonal MXU matmul ----
        w2 = w_ref[base + 8:base + 8 + TWOM, 0:TWOM]                 # (2M, 2M)
        b2 = w_ref[base + 5:base + 6, 0:TWOM]                        # (1, 2M)
        h = _leaky_relu(jnp.dot(h, w2, preferred_element_type=jnp.float32) + b2)

        # ---- fused layer 3: one block-diagonal MXU matmul ----
        w3 = w_ref[base + 8:base + 8 + TWOM, TWOM:TWOM + 2 * DH]     # (2M, 2*DH)
        b3 = w_ref[base + 6:base + 7, 0:2 * DH]                      # (1, 2*DH)
        st = jnp.dot(h, w3, preferred_element_type=jnp.float32) + b3 # (TB, 2*DH)

        s = jnp.tanh(st[:, 0:DH])        # s half (tanh head, EUP)
        t = st[:, DH:2 * DH]             # t half

        # forward coupling: yb = (xb - t) * exp(-s)
        yb = (b - t) * jnp.exp(-s)

        # log_det_J -= log(|exp(sum s)| + 1e-8)  ==  -sum(s)  (to <1e-6, see header)
        log_det = log_det - jnp.sum(s, axis=1, keepdims=True)

        # flip(1) permutation folded into host-side weight permutation:
        # in-kernel it reduces to swapping the roles of the two halves.
        a, b = yb, a

    # prior.log_prob(z) for standard normal N(0, I_D); sum(z*z) is permutation-
    # invariant so the final flip needs no materialization.
    sq = (jnp.sum(a * a, axis=1, keepdims=True)
          + jnp.sum(b * b, axis=1, keepdims=True))                   # (TB, 1)
    logp = -0.5 * sq - 0.5 * D * LOG2PI
    nll = -(logp + log_det)                                          # (TB, 1)
    out_ref[0, 0] = jnp.sum(nll)         # per-tile partial sum -> SMEM scalar


def init_params(key):
    keys = jax.random.split(key, 12)

    def w(k, shape):
        return (0.1 * jax.random.normal(k, shape)).astype(jnp.float32)

    ws1 = w(keys[0], (NUM_FLOWS, DH, M));  bs1 = w(keys[1], (NUM_FLOWS, 1, M))
    ws2 = w(keys[2], (NUM_FLOWS, M, M));   bs2 = w(keys[3], (NUM_FLOWS, 1, M))
    ws3 = w(keys[4], (NUM_FLOWS, M, DH));  bs3 = w(keys[5], (NUM_FLOWS, 1, DH))
    wt1 = w(keys[6], (NUM_FLOWS, DH, M));  bt1 = w(keys[7], (NUM_FLOWS, 1, M))
    wt2 = w(keys[8], (NUM_FLOWS, M, M));   bt2 = w(keys[9], (NUM_FLOWS, 1, M))
    wt3 = w(keys[10], (NUM_FLOWS, M, DH)); bt3 = w(keys[11], (NUM_FLOWS, 1, DH))
    return (ws1, bs1, ws2, bs2, ws3, bs3, wt1, bt1, wt2, bt2, wt3, bt3)


def pack_params(params):
    """Host-side packing: fuse s/t nets, fold flip(1) into weight permutations,
    and lay everything out as one lane-dense (TOTAL_ROWS, 128) f32 slab."""
    ws1, bs1, ws2, bs2, ws3, bs3, wt1, bt1, wt2, bt2, wt3, bt3 = params
    slab = np.zeros((TOTAL_ROWS, LANES), np.float32)
    for i in range(NUM_FLOWS):
        p = i % 2  # parity of the accumulated intra-half reversal
        w1s = np.asarray(ws1[i]); w1t = np.asarray(wt1[i])        # (DH, M)
        w3s = np.asarray(ws3[i]); w3t = np.asarray(wt3[i])        # (M, DH)
        b3s = np.asarray(bs3[i]).reshape(-1)
        b3t = np.asarray(bt3[i]).reshape(-1)
        if p == 1:
            # fold "xa is reversed" into layer-1 rows, and produce reversed s/t
            # (so they align with the held, un-reversed xb) via layer-3 columns.
            w1s = w1s[::-1, :]; w1t = w1t[::-1, :]
            w3s = w3s[:, ::-1]; w3t = w3t[:, ::-1]
            b3s = b3s[::-1];    b3t = b3t[::-1]

        base = i * ROWS_PER_FLOW
        # fused layer 1
        slab[base:base + DH, 0:M] = w1s
        slab[base:base + DH, M:TWOM] = w1t
        slab[base + DH, 0:M] = np.asarray(bs1[i]).reshape(-1)
        slab[base + DH, M:TWOM] = np.asarray(bt1[i]).reshape(-1)
        # fused biases for layers 2 and 3
        slab[base + 5, 0:M] = np.asarray(bs2[i]).reshape(-1)
        slab[base + 5, M:TWOM] = np.asarray(bt2[i]).reshape(-1)
        slab[base + 6, 0:DH] = b3s
        slab[base + 6, DH:2 * DH] = b3t
        # block-diagonal layer 2
        slab[base + 8:base + 8 + M, 0:M] = np.asarray(ws2[i])
        slab[base + 8 + M:base + 8 + TWOM, M:TWOM] = np.asarray(wt2[i])
        # block-diagonal layer 3 (stored alongside layer 2 in lanes 2M:2M+2*DH)
        slab[base + 8:base + 8 + M, TWOM:TWOM + DH] = w3s
        slab[base + 8 + M:base + 8 + TWOM, TWOM + DH:TWOM + 2 * DH] = w3t
    return jnp.asarray(slab)


@partial(jax.jit, static_argnames=("batch_tile",))
def _realnvp_nll(x, slab, *, batch_tile):
    bsz = x.shape[0]
    grid = bsz // batch_tile
    partials = pl.pallas_call(
        realnvp_kernel,
        out_shape=jax.ShapeDtypeStruct((grid, 1), jnp.float32),
        grid=(grid,),
        in_specs=[
            pl.BlockSpec((batch_tile, D), lambda i: (i, 0)),         # x tiles over batch
            pl.BlockSpec((TOTAL_ROWS, LANES), lambda i: (0, 0)),     # weights stay resident
        ],
        out_specs=pl.BlockSpec((1, 1), lambda i: (i, 0),
                               memory_space=pltpu.MemorySpace.SMEM),
        compiler_params=pltpu.CompilerParams(
            dimension_semantics=("parallel",)),
    )(x, slab)
    return jnp.sum(partials) / bsz


def realnvp_forward(x, params, *, batch_tile=None):
    """Negative mean log-likelihood (reduction='avg') of the RealNVP forward."""
    slab = pack_params(params)           # runs once, host-side
    x = x.astype(jnp.float32)
    bsz = x.shape[0]
    if batch_tile is None:
        batch_tile = bsz if bsz <= MAX_BATCH_TILE else MAX_BATCH_TILE
    assert bsz % batch_tile == 0, "batch must be a multiple of the batch tile"
    return _realnvp_nll(x, slab, batch_tile=batch_tile)


def realnvp_reference(x, params):
    """Pure-JAX reference mirroring the PyTorch forward (reduction='avg')."""
    ws1, bs1, ws2, bs2, ws3, bs3, wt1, bt1, wt2, bt2, wt3, bt3 = params
    z = x
    log_det = jnp.zeros((x.shape[0],), jnp.float32)
    for i in range(NUM_FLOWS):
        xa, xb = z[:, :DH], z[:, DH:]
        h = _leaky_relu(xa @ ws1[i] + bs1[i])
        h = _leaky_relu(h @ ws2[i] + bs2[i])
        s = jnp.tanh(h @ ws3[i] + bs3[i])
        g = _leaky_relu(xa @ wt1[i] + bt1[i])
        g = _leaky_relu(g @ wt2[i] + bt2[i])
        t = g @ wt3[i] + bt3[i]
        yb = (xb - t) * jnp.exp(-s)
        z = jnp.concatenate([xa, yb], axis=1)[:, ::-1]        # permute = flip(1)
        log_det = log_det - jnp.log(jnp.abs(jnp.exp(s.sum(axis=1))) + 1e-8)
    logp = -0.5 * jnp.sum(z * z, axis=1) - 0.5 * D * jnp.log(2.0 * jnp.pi)
    return -(logp + log_det).mean()


if __name__ == "__main__":
    key = jax.random.PRNGKey(0)
    kx, kp = jax.random.split(key)
    x = jax.random.normal(kx, (B, D), dtype=jnp.float32)
    params = init_params(kp)

    out = jax.block_until_ready(realnvp_forward(x, params))

    ref = realnvp_reference(x, params)
    np.testing.assert_allclose(np.asarray(out), np.asarray(ref), rtol=2e-3, atol=2e-3)

    print("KERNEL_OK")
</pallas_src>

<mosaic_0001>
module attributes {stable_mosaic.version = 11 : i64} {
  func.func @realnvp_kernel(%arg0: i32, %arg1: memref<8x8xf32, #tpu.memory_space<vmem>>, %arg2: memref<288x128xf32, #tpu.memory_space<vmem>>, %arg3: memref<1x1xf32, #tpu.memory_space<smem>>) attributes {dimension_semantics = [#tpu.dimension_semantics<parallel>], iteration_bounds = array<i64: 1>, scalar_prefetch = 0 : i64, scratch_operands = 0 : i64, tpu.core_type = #tpu.core_type<tc>, window_params = [{transform_indices = @transform_0, window_bounds = array<i64: 8, 8>}, {pipeline_mode = #tpu.pipeline_mode<synchronous>, transform_indices = @transform_1, window_bounds = array<i64: 288, 128>}, {transform_indices = @transform_2, window_bounds = array<i64: 1, 1>}]} {
    %c0 = arith.constant 0 : index
    %c0_0 = arith.constant 0 : index
    %0 = vector.load %arg1[%c0, %c0_0] : memref<8x8xf32, #tpu.memory_space<vmem>>, vector<8x8xf32>
    %1 = vector.extract_strided_slice %0 {offsets = [0, 0], sizes = [8, 4], strides = [1, 1]} : vector<8x8xf32> to vector<8x4xf32>
    %2 = vector.extract_strided_slice %0 {offsets = [0, 4], sizes = [8, 4], strides = [1, 1]} : vector<8x8xf32> to vector<8x4xf32>
    %cst = arith.constant 0.000000e+00 : f32
    %3 = vector.broadcast %cst : f32 to vector<8x1xf32>
    %c4 = arith.constant 4 : index
    %c0_1 = arith.constant 0 : index
    %4 = vector.load %arg2[%c4, %c0_1] : memref<288x128xf32, #tpu.memory_space<vmem>>, vector<1x64xf32>
    %5 = vector.extract_strided_slice %1 {offsets = [0, 0], sizes = [8, 1], strides = [1, 1]} : vector<8x4xf32> to vector<8x1xf32>
    %c0_2 = arith.constant 0 : index
    %c0_3 = arith.constant 0 : index
    %6 = vector.load %arg2[%c0_2, %c0_3] : memref<288x128xf32, #tpu.memory_space<vmem>>, vector<1x64xf32>
    %7 = vector.broadcast %5 : vector<8x1xf32> to vector<8x64xf32>
    %8 = vector.broadcast %6 : vector<1x64xf32> to vector<8x64xf32>
    %9 = arith.mulf %7, %8 : vector<8x64xf32>
    %10 = vector.broadcast %4 : vector<1x64xf32> to vector<8x64xf32>
    %11 = arith.addf %10, %9 : vector<8x64xf32>
    %12 = vector.extract_strided_slice %1 {offsets = [0, 1], sizes = [8, 1], strides = [1, 1]} : vector<8x4xf32> to vector<8x1xf32>
    %c1 = arith.constant 1 : index
    %c0_4 = arith.constant 0 : index
    %13 = vector.load %arg2[%c1, %c0_4] : memref<288x128xf32, #tpu.memory_space<vmem>>, vector<1x64xf32>
    %14 = vector.broadcast %12 : vector<8x1xf32> to vector<8x64xf32>
    %15 = vector.broadcast %13 : vector<1x64xf32> to vector<8x64xf32>
    %16 = arith.mulf %14, %15 : vector<8x64xf32>
    %17 = arith.addf %11, %16 : vector<8x64xf32>
    %18 = vector.extract_strided_slice %1 {offsets = [0, 2], sizes = [8, 1], strides = [1, 1]} : vector<8x4xf32> to vector<8x1xf32>
    %c2 = arith.constant 2 : index
    %c0_5 = arith.constant 0 : index
    %19 = vector.load %arg2[%c2, %c0_5] : memref<288x128xf32, #tpu.memory_space<vmem>>, vector<1x64xf32>
    %20 = vector.broadcast %18 : vector<8x1xf32> to vector<8x64xf32>
    %21 = vector.broadcast %19 : vector<1x64xf32> to vector<8x64xf32>
    %22 = arith.mulf %20, %21 : vector<8x64xf32>
    %23 = arith.addf %17, %22 : vector<8x64xf32>
    %24 = vector.extract_strided_slice %1 {offsets = [0, 3], sizes = [8, 1], strides = [1, 1]} : vector<8x4xf32> to vector<8x1xf32>
    %c3 = arith.constant 3 : index
    %c0_6 = arith.constant 0 : index
    %25 = vector.load %arg2[%c3, %c0_6] : memref<288x128xf32, #tpu.memory_space<vmem>>, vector<1x64xf32>
    %26 = vector.broadcast %24 : vector<8x1xf32> to vector<8x64xf32>
    %27 = vector.broadcast %25 : vector<1x64xf32> to vector<8x64xf32>
    %28 = arith.mulf %26, %27 : vector<8x64xf32>
    %29 = arith.addf %23, %28 : vector<8x64xf32>
    %cst_7 = arith.constant 0.000000e+00 : f32
    %30 = vector.broadcast %cst_7 : f32 to vector<8x64xf32>
    %31 = arith.cmpf ogt, %29, %30 : vector<8x64xf32>
    %cst_8 = arith.constant 0.00999999977 : f32
    %32 = vector.broadcast %cst_8 : f32 to vector<8x64xf32>
    %33 = arith.mulf %32, %29 : vector<8x64xf32>
    %34 = arith.select %31, %29, %33 : vector<8x64xi1>, vector<8x64xf32>
    %c8 = arith.constant 8 : index
    %c0_9 = arith.constant 0 : index
    %35 = vector.load %arg2[%c8, %c0_9] : memref<288x128xf32, #tpu.memory_space<vmem>>, vector<64x64xf32>
    %c5 = arith.constant 5 : index
    %c0_10 = arith.constant 0 : index
    %36 = vector.load %arg2[%c5, %c0_10] : memref<288x128xf32, #tpu.memory_space<vmem>>, vector<1x64xf32>
    %cst_11 = arith.constant dense<0.000000e+00> : vector<8x64xf32>
    %37 = tpu.matmul %34, %35, %cst_11 {dimension_numbers = #tpu.dot_dimension_numbers<[1], [0], [0], [1], [0, 0, 1, 1], [], []>} : vector<8x64xf32>, vector<64x64xf32>, vector<8x64xf32> -> vector<8x64xf32>
    %38 = vector.broadcast %36 : vector<1x64xf32> to vector<8x64xf32>
    %39 = arith.addf %37, %38 : vector<8x64xf32>
    %cst_12 = arith.constant 0.000000e+00 : f32
    %40 = vector.broadcast %cst_12 : f32 to vector<8x64xf32>
    %41 = arith.cmpf ogt, %39, %40 : vector<8x64xf32>
    %cst_13 = arith.constant 0.00999999977 : f32
    %42 = vector.broadcast %cst_13 : f32 to vector<8x64xf32>
    %43 = arith.mulf %42, %39 : vector<8x64xf32>
    %44 = arith.select %41, %39, %43 : vector<8x64xi1>, vector<8x64xf32>
    %c8_14 = arith.constant 8 : index
    %c64 = arith.constant 64 : index
    %45 = vector.load %arg2[%c8_14, %c64] : memref<288x128xf32, #tpu.memory_space<vmem>>, vector<64x8xf32>
    %c6 = arith.constant 6 : index
    %c0_15 = arith.constant 0 : index
    %46 = vector.load %arg2[%c6, %c0_15] : memref<288x128xf32, #tpu.memory_space<vmem>>, vector<1x8xf32>
    %cst_16 = arith.constant dense<0.000000e+00> : vector<8x8xf32>
    %47 = tpu.matmul %44, %45, %cst_16 {dimension_numbers = #tpu.dot_dimension_numbers<[1], [0], [0], [1], [0, 0, 1, 1], [], []>} : vector<8x64xf32>, vector<64x8xf32>, vector<8x8xf32> -> vector<8x8xf32>
    %48 = vector.broadcast %46 : vector<1x8xf32> to vector<8x8xf32>
    %49 = arith.addf %47, %48 : vector<8x8xf32>
    %50 = vector.extract_strided_slice %49 {offsets = [0, 0], sizes = [8, 4], strides = [1, 1]} : vector<8x8xf32> to vector<8x4xf32>
    %51 = math.tanh %50 : vector<8x4xf32>
    %52 = vector.extract_strided_slice %49 {offsets = [0, 4], sizes = [8, 4], strides = [1, 1]} : vector<8x8xf32> to vector<8x4xf32>
    %53 = arith.subf %2, %52 : vector<8x4xf32>
    %cst_17 = arith.constant 0.000000e+00 : f32
    %54 = vector.broadcast %cst_17 : f32 to vector<8x4xf32>
    %55 = arith.subf %54, %51 : vector<8x4xf32>
    %56 = math.exp %55 : vector<8x4xf32>
    %57 = arith.mulf %53, %56 : vector<8x4xf32>
    %cst_18 = arith.constant dense<0.000000e+00> : vector<8xf32>
    %58 = vector.multi_reduction <add>, %51, %cst_18 [1] : vector<8x4xf32> to vector<8xf32>
    %59 = vector.shape_cast %58 : vector<8xf32> to vector<8x1xf32>
    %60 = arith.subf %3, %59 : vector<8x1xf32>
    %c76 = arith.constant 76 : index
    %c0_19 = arith.constant 0 : index
    %61 = vector.load %arg2[%c76, %c0_19] : memref<288x128xf32, #tpu.memory_space<vmem>>, vector<1x64xf32>
    %62 = vector.extract_strided_slice %57 {offsets = [0, 0], sizes = [8, 1], strides = [1, 1]} : vector<8x4xf32> to vector<8x1xf32>
    %c72 = arith.constant 72 : index
    %c0_20 = arith.constant 0 : index
    %63 = vector.load %arg2[%c72, %c0_20] : memref<288x128xf32, #tpu.memory_space<vmem>>, vector<1x64xf32>
    %64 = vector.broadcast %62 : vector<8x1xf32> to vector<8x64xf32>
    %65 = vector.broadcast %63 : vector<1x64xf32> to vector<8x64xf32>
    %66 = arith.mulf %64, %65 : vector<8x64xf32>
    %67 = vector.broadcast %61 : vector<1x64xf32> to vector<8x64xf32>
    %68 = arith.addf %67, %66 : vector<8x64xf32>
    %69 = vector.extract_strided_slice %57 {offsets = [0, 1], sizes = [8, 1], strides = [1, 1]} : vector<8x4xf32> to vector<8x1xf32>
    %c73 = arith.constant 73 : index
    %c0_21 = arith.constant 0 : index
    %70 = vector.load %arg2[%c73, %c0_21] : memref<288x128xf32, #tpu.memory_space<vmem>>, vector<1x64xf32>
    %71 = vector.broadcast %69 : vector<8x1xf32> to vector<8x64xf32>
    %72 = vector.broadcast %70 : vector<1x64xf32> to vector<8x64xf32>
    %73 = arith.mulf %71, %72 : vector<8x64xf32>
    %74 = arith.addf %68, %73 : vector<8x64xf32>
    %75 = vector.extract_strided_slice %57 {offsets = [0, 2], sizes = [8, 1], strides = [1, 1]} : vector<8x4xf32> to vector<8x1xf32>
    %c74 = arith.constant 74 : index
    %c0_22 = arith.constant 0 : index
    %76 = vector.load %arg2[%c74, %c0_22] : memref<288x128xf32, #tpu.memory_space<vmem>>, vector<1x64xf32>
    %77 = vector.broadcast %75 : vector<8x1xf32> to vector<8x64xf32>
    %78 = vector.broadcast %76 : vector<1x64xf32> to vector<8x64xf32>
    %79 = arith.mulf %77, %78 : vector<8x64xf32>
    %80 = arith.addf %74, %79 : vector<8x64xf32>
    %81 = vector.extract_strided_slice %57 {offsets = [0, 3], sizes = [8, 1], strides = [1, 1]} : vector<8x4xf32> to vector<8x1xf32>
    %c75 = arith.constant 75 : index
    %c0_23 = arith.constant 0 : index
    %82 = vector.load %arg2[%c75, %c0_23] : memref<288x128xf32, #tpu.memory_space<vmem>>, vector<1x64xf32>
    %83 = vector.broadcast %81 : vector<8x1xf32> to vector<8x64xf32>
    %84 = vector.broadcast %82 : vector<1x64xf32> to vector<8x64xf32>
    %85 = arith.mulf %83, %84 : vector<8x64xf32>
    %86 = arith.addf %80, %85 : vector<8x64xf32>
    %cst_24 = arith.constant 0.000000e+00 : f32
    %87 = vector.broadcast %cst_24 : f32 to vector<8x64xf32>
    %88 = arith.cmpf ogt, %86, %87 : vector<8x64xf32>
    %cst_25 = arith.constant 0.00999999977 : f32
    %89 = vector.broadcast %cst_25 : f32 to vector<8x64xf32>
    %90 = arith.mulf %89, %86 : vector<8x64xf32>
    %91 = arith.select %88, %86, %90 : vector<8x64xi1>, vector<8x64xf32>
    %c80 = arith.constant 80 : index
    %c0_26 = arith.constant 0 : index
    %92 = vector.load %arg2[%c80, %c0_26] : memref<288x128xf32, #tpu.memory_space<vmem>>, vector<64x64xf32>
    %c77 = arith.constant 77 : index
    %c0_27 = arith.constant 0 : index
    %93 = vector.load %arg2[%c77, %c0_27] : memref<288x128xf32, #tpu.memory_space<vmem>>, vector<1x64xf32>
    %cst_28 = arith.constant dense<0.000000e+00> : vector<8x64xf32>
    %94 = tpu.matmul %91, %92, %cst_28 {dimension_numbers = #tpu.dot_dimension_numbers<[1], [0], [0], [1], [0, 0, 1, 1], [], []>} : vector<8x64xf32>, vector<64x64xf32>, vector<8x64xf32> -> vector<8x64xf32>
    %95 = vector.broadcast %93 : vector<1x64xf32> to vector<8x64xf32>
    %96 = arith.addf %94, %95 : vector<8x64xf32>
    %cst_29 = arith.constant 0.000000e+00 : f32
    %97 = vector.broadcast %cst_29 : f32 to vector<8x64xf32>
    %98 = arith.cmpf ogt, %96, %97 : vector<8x64xf32>
    %cst_30 = arith.constant 0.00999999977 : f32
    %99 = vector.broadcast %cst_30 : f32 to vector<8x64xf32>
    %100 = arith.mulf %99, %96 : vector<8x64xf32>
    %101 = arith.select %98, %96, %100 : vector<8x64xi1>, vector<8x64xf32>
    %c80_31 = arith.constant 80 : index
    %c64_32 = arith.constant 64 : index
    %102 = vector.load %arg2[%c80_31, %c64_32] : memref<288x128xf32, #tpu.memory_space<vmem>>, vector<64x8xf32>
    %c78 = arith.constant 78 : index
    %c0_33 = arith.constant 0 : index
    %103 = vector.load %arg2[%c78, %c0_33] : memref<288x128xf32, #tpu.memory_space<vmem>>, vector<1x8xf32>
    %cst_34 = arith.constant dense<0.000000e+00> : vector<8x8xf32>
    %104 = tpu.matmul %101, %102, %cst_34 {dimension_numbers = #tpu.dot_dimension_numbers<[1], [0], [0], [1], [0, 0, 1, 1], [], []>} : vector<8x64xf32>, vector<64x8xf32>, vector<8x8xf32> -> vector<8x8xf32>
    %105 = vector.broadcast %103 : vector<1x8xf32> to vector<8x8xf32>
    %106 = arith.addf %104, %105 : vector<8x8xf32>
    %107 = vector.extract_strided_slice %106 {offsets = [0, 0], sizes = [8, 4], strides = [1, 1]} : vector<8x8xf32> to vector<8x4xf32>
    %108 = math.tanh %107 : vector<8x4xf32>
    %109 = vector.extract_strided_slice %106 {offsets = [0, 4], sizes = [8, 4], strides = [1, 1]} : vector<8x8xf32> to vector<8x4xf32>
    %110 = arith.subf %1, %109 : vector<8x4xf32>
    %cst_35 = arith.constant 0.000000e+00 : f32
    %111 = vector.broadcast %cst_35 : f32 to vector<8x4xf32>
    %112 = arith.subf %111, %108 : vector<8x4xf32>
    %113 = math.exp %112 : vector<8x4xf32>
    %114 = arith.mulf %110, %113 : vector<8x4xf32>
    %cst_36 = arith.constant dense<0.000000e+00> : vector<8xf32>
    %115 = vector.multi_reduction <add>, %108, %cst_36 [1] : vector<8x4xf32> to vector<8xf32>
    %116 = vector.shape_cast %115 : vector<8xf32> to vector<8x1xf32>
    %117 = arith.subf %60, %116 : vector<8x1xf32>
    %c148 = arith.constant 148 : index
    %c0_37 = arith.constant 0 : index
    %118 = vector.load %arg2[%c148, %c0_37] : memref<288x128xf32, #tpu.memory_space<vmem>>, vector<1x64xf32>
    %119 = vector.extract_strided_slice %114 {offsets = [0, 0], sizes = [8, 1], strides = [1, 1]} : vector<8x4xf32> to vector<8x1xf32>
    %c144 = arith.constant 144 : index
    %c0_38 = arith.constant 0 : index
    %120 = vector.load %arg2[%c144, %c0_38] : memref<288x128xf32, #tpu.memory_space<vmem>>, vector<1x64xf32>
    %121 = vector.broadcast %119 : vector<8x1xf32> to vector<8x64xf32>
    %122 = vector.broadcast %120 : vector<1x64xf32> to vector<8x64xf32>
    %123 = arith.mulf %121, %122 : vector<8x64xf32>
    %124 = vector.broadcast %118 : vector<1x64xf32> to vector<8x64xf32>
    %125 = arith.addf %124, %123 : vector<8x64xf32>
    %126 = vector.extract_strided_slice %114 {offsets = [0, 1], sizes = [8, 1], strides = [1, 1]} : vector<8x4xf32> to vector<8x1xf32>
    %c145 = arith.constant 145 : index
    %c0_39 = arith.constant 0 : index
    %127 = vector.load %arg2[%c145, %c0_39] : memref<288x128xf32, #tpu.memory_space<vmem>>, vector<1x64xf32>
    %128 = vector.broadcast %126 : vector<8x1xf32> to vector<8x64xf32>
    %129 = vector.broadcast %127 : vector<1x64xf32> to vector<8x64xf32>
    %130 = arith.mulf %128, %129 : vector<8x64xf32>
    %131 = arith.addf %125, %130 : vector<8x64xf32>
    %132 = vector.extract_strided_slice %114 {offsets = [0, 2], sizes = [8, 1], strides = [1, 1]} : vector<8x4xf32> to vector<8x1xf32>
    %c146 = arith.constant 146 : index
    %c0_40 = arith.constant 0 : index
    %133 = vector.load %arg2[%c146, %c0_40] : memref<288x128xf32, #tpu.memory_space<vmem>>, vector<1x64xf32>
    %134 = vector.broadcast %132 : vector<8x1xf32> to vector<8x64xf32>
    %135 = vector.broadcast %133 : vector<1x64xf32> to vector<8x64xf32>
    %136 = arith.mulf %134, %135 : vector<8x64xf32>
    %137 = arith.addf %131, %136 : vector<8x64xf32>
    %138 = vector.extract_strided_slice %114 {offsets = [0, 3], sizes = [8, 1], strides = [1, 1]} : vector<8x4xf32> to vector<8x1xf32>
    %c147 = arith.constant 147 : index
    %c0_41 = arith.constant 0 : index
    %139 = vector.load %arg2[%c147, %c0_41] : memref<288x128xf32, #tpu.memory_space<vmem>>, vector<1x64xf32>
    %140 = vector.broadcast %138 : vector<8x1xf32> to vector<8x64xf32>
    %141 = vector.broadcast %139 : vector<1x64xf32> to vector<8x64xf32>
    %142 = arith.mulf %140, %141 : vector<8x64xf32>
    %143 = arith.addf %137, %142 : vector<8x64xf32>
    %cst_42 = arith.constant 0.000000e+00 : f32
    %144 = vector.broadcast %cst_42 : f32 to vector<8x64xf32>
    %145 = arith.cmpf ogt, %143, %144 : vector<8x64xf32>
    %cst_43 = arith.constant 0.00999999977 : f32
    %146 = vector.broadcast %cst_43 : f32 to vector<8x64xf32>
    %147 = arith.mulf %146, %143 : vector<8x64xf32>
    %148 = arith.select %145, %143, %147 : vector<8x64xi1>, vector<8x64xf32>
    %c152 = arith.constant 152 : index
    %c0_44 = arith.constant 0 : index
    %149 = vector.load %arg2[%c152, %c0_44] : memref<288x128xf32, #tpu.memory_space<vmem>>, vector<64x64xf32>
    %c149 = arith.constant 149 : index
    %c0_45 = arith.constant 0 : index
    %150 = vector.load %arg2[%c149, %c0_45] : memref<288x128xf32, #tpu.memory_space<vmem>>, vector<1x64xf32>
    %cst_46 = arith.constant dense<0.000000e+00> : vector<8x64xf32>
    %151 = tpu.matmul %148, %149, %cst_46 {dimension_numbers = #tpu.dot_dimension_numbers<[1], [0], [0], [1], [0, 0, 1, 1], [], []>} : vector<8x64xf32>, vector<64x64xf32>, vector<8x64xf32> -> vector<8x64xf32>
    %152 = vector.broadcast %150 : vector<1x64xf32> to vector<8x64xf32>
    %153 = arith.addf %151, %152 : vector<8x64xf32>
    %cst_47 = arith.constant 0.000000e+00 : f32
    %154 = vector.broadcast %cst_47 : f32 to vector<8x64xf32>
    %155 = arith.cmpf ogt, %153, %154 : vector<8x64xf32>
    %cst_48 = arith.constant 0.00999999977 : f32
    %156 = vector.broadcast %cst_48 : f32 to vector<8x64xf32>
    %157 = arith.mulf %156, %153 : vector<8x64xf32>
    %158 = arith.select %155, %153, %157 : vector<8x64xi1>, vector<8x64xf32>
    %c152_49 = arith.constant 152 : index
    %c64_50 = arith.constant 64 : index
    %159 = vector.load %arg2[%c152_49, %c64_50] : memref<288x128xf32, #tpu.memory_space<vmem>>, vector<64x8xf32>
    %c150 = arith.constant 150 : index
    %c0_51 = arith.constant 0 : index
    %160 = vector.load %arg2[%c150, %c0_51] : memref<288x128xf32, #tpu.memory_space<vmem>>, vector<1x8xf32>
    %cst_52 = arith.constant dense<0.000000e+00> : vector<8x8xf32>
    %161 = tpu.matmul %158, %159, %cst_52 {dimension_numbers = #tpu.dot_dimension_numbers<[1], [0], [0], [1], [0, 0, 1, 1], [], []>} : vector<8x64xf32>, vector<64x8xf32>, vector<8x8xf32> -> vector<8x8xf32>
    %162 = vector.broadcast %160 : vector<1x8xf32> to vector<8x8xf32>
    %163 = arith.addf %161, %162 : vector<8x8xf32>
    %164 = vector.extract_strided_slice %163 {offsets = [0, 0], sizes = [8, 4], strides = [1, 1]} : vector<8x8xf32> to vector<8x4xf32>
    %165 = math.tanh %164 : vector<8x4xf32>
    %166 = vector.extract_strided_slice %163 {offsets = [0, 4], sizes = [8, 4], strides = [1, 1]} : vector<8x8xf32> to vector<8x4xf32>
    %167 = arith.subf %57, %166 : vector<8x4xf32>
    %cst_53 = arith.constant 0.000000e+00 : f32
    %168 = vector.broadcast %cst_53 : f32 to vector<8x4xf32>
    %169 = arith.subf %168, %165 : vector<8x4xf32>
    %170 = math.exp %169 : vector<8x4xf32>
    %171 = arith.mulf %167, %170 : vector<8x4xf32>
    %cst_54 = arith.constant dense<0.000000e+00> : vector<8xf32>
    %172 = vector.multi_reduction <add>, %165, %cst_54 [1] : vector<8x4xf32> to vector<8xf32>
    %173 = vector.shape_cast %172 : vector<8xf32> to vector<8x1xf32>
    %174 = arith.subf %117, %173 : vector<8x1xf32>
    %c220 = arith.constant 220 : index
    %c0_55 = arith.constant 0 : index
    %175 = vector.load %arg2[%c220, %c0_55] : memref<288x128xf32, #tpu.memory_space<vmem>>, vector<1x64xf32>
    %176 = vector.extract_strided_slice %171 {offsets = [0, 0], sizes = [8, 1], strides = [1, 1]} : vector<8x4xf32> to vector<8x1xf32>
    %c216 = arith.constant 216 : index
    %c0_56 = arith.constant 0 : index
    %177 = vector.load %arg2[%c216, %c0_56] : memref<288x128xf32, #tpu.memory_space<vmem>>, vector<1x64xf32>
    %178 = vector.broadcast %176 : vector<8x1xf32> to vector<8x64xf32>
    %179 = vector.broadcast %177 : vector<1x64xf32> to vector<8x64xf32>
    %180 = arith.mulf %178, %179 : vector<8x64xf32>
    %181 = vector.broadcast %175 : vector<1x64xf32> to vector<8x64xf32>
    %182 = arith.addf %181, %180 : vector<8x64xf32>
    %183 = vector.extract_strided_slice %171 {offsets = [0, 1], sizes = [8, 1], strides = [1, 1]} : vector<8x4xf32> to vector<8x1xf32>
    %c217 = arith.constant 217 : index
    %c0_57 = arith.constant 0 : index
    %184 = vector.load %arg2[%c217, %c0_57] : memref<288x128xf32, #tpu.memory_space<vmem>>, vector<1x64xf32>
    %185 = vector.broadcast %183 : vector<8x1xf32> to vector<8x64xf32>
    %186 = vector.broadcast %184 : vector<1x64xf32> to vector<8x64xf32>
    %187 = arith.mulf %185, %186 : vector<8x64xf32>
    %188 = arith.addf %182, %187 : vector<8x64xf32>
    %189 = vector.extract_strided_slice %171 {offsets = [0, 2], sizes = [8, 1], strides = [1, 1]} : vector<8x4xf32> to vector<8x1xf32>
    %c218 = arith.constant 218 : index
    %c0_58 = arith.constant 0 : index
    %190 = vector.load %arg2[%c218, %c0_58] : memref<288x128xf32, #tpu.memory_space<vmem>>, vector<1x64xf32>
    %191 = vector.broadcast %189 : vector<8x1xf32> to vector<8x64xf32>
    %192 = vector.broadcast %190 : vector<1x64xf32> to vector<8x64xf32>
    %193 = arith.mulf %191, %192 : vector<8x64xf32>
    %194 = arith.addf %188, %193 : vector<8x64xf32>
    %195 = vector.extract_strided_slice %171 {offsets = [0, 3], sizes = [8, 1], strides = [1, 1]} : vector<8x4xf32> to vector<8x1xf32>
    %c219 = arith.constant 219 : index
    %c0_59 = arith.constant 0 : index
    %196 = vector.load %arg2[%c219, %c0_59] : memref<288x128xf32, #tpu.memory_space<vmem>>, vector<1x64xf32>
    %197 = vector.broadcast %195 : vector<8x1xf32> to vector<8x64xf32>
    %198 = vector.broadcast %196 : vector<1x64xf32> to vector<8x64xf32>
    %199 = arith.mulf %197, %198 : vector<8x64xf32>
    %200 = arith.addf %194, %199 : vector<8x64xf32>
    %cst_60 = arith.constant 0.000000e+00 : f32
    %201 = vector.broadcast %cst_60 : f32 to vector<8x64xf32>
    %202 = arith.cmpf ogt, %200, %201 : vector<8x64xf32>
    %cst_61 = arith.constant 0.00999999977 : f32
    %203 = vector.broadcast %cst_61 : f32 to vector<8x64xf32>
    %204 = arith.mulf %203, %200 : vector<8x64xf32>
    %205 = arith.select %202, %200, %204 : vector<8x64xi1>, vector<8x64xf32>
    %c224 = arith.constant 224 : index
    %c0_62 = arith.constant 0 : index
    %206 = vector.load %arg2[%c224, %c0_62] : memref<288x128xf32, #tpu.memory_space<vmem>>, vector<64x64xf32>
    %c221 = arith.constant 221 : index
    %c0_63 = arith.constant 0 : index
    %207 = vector.load %arg2[%c221, %c0_63] : memref<288x128xf32, #tpu.memory_space<vmem>>, vector<1x64xf32>
    %cst_64 = arith.constant dense<0.000000e+00> : vector<8x64xf32>
    %208 = tpu.matmul %205, %206, %cst_64 {dimension_numbers = #tpu.dot_dimension_numbers<[1], [0], [0], [1], [0, 0, 1, 1], [], []>} : vector<8x64xf32>, vector<64x64xf32>, vector<8x64xf32> -> vector<8x64xf32>
    %209 = vector.broadcast %207 : vector<1x64xf32> to vector<8x64xf32>
    %210 = arith.addf %208, %209 : vector<8x64xf32>
    %cst_65 = arith.constant 0.000000e+00 : f32
    %211 = vector.broadcast %cst_65 : f32 to vector<8x64xf32>
    %212 = arith.cmpf ogt, %210, %211 : vector<8x64xf32>
    %cst_66 = arith.constant 0.00999999977 : f32
    %213 = vector.broadcast %cst_66 : f32 to vector<8x64xf32>
    %214 = arith.mulf %213, %210 : vector<8x64xf32>
    %215 = arith.select %212, %210, %214 : vector<8x64xi1>, vector<8x64xf32>
    %c224_67 = arith.constant 224 : index
    %c64_68 = arith.constant 64 : index
    %216 = vector.load %arg2[%c224_67, %c64_68] : memref<288x128xf32, #tpu.memory_space<vmem>>, vector<64x8xf32>
    %c222 = arith.constant 222 : index
    %c0_69 = arith.constant 0 : index
    %217 = vector.load %arg2[%c222, %c0_69] : memref<288x128xf32, #tpu.memory_space<vmem>>, vector<1x8xf32>
    %cst_70 = arith.constant dense<0.000000e+00> : vector<8x8xf32>
    %218 = tpu.matmul %215, %216, %cst_70 {dimension_numbers = #tpu.dot_dimension_numbers<[1], [0], [0], [1], [0, 0, 1, 1], [], []>} : vector<8x64xf32>, vector<64x8xf32>, vector<8x8xf32> -> vector<8x8xf32>
    %219 = vector.broadcast %217 : vector<1x8xf32> to vector<8x8xf32>
    %220 = arith.addf %218, %219 : vector<8x8xf32>
    %221 = vector.extract_strided_slice %220 {offsets = [0, 0], sizes = [8, 4], strides = [1, 1]} : vector<8x8xf32> to vector<8x4xf32>
    %222 = math.tanh %221 : vector<8x4xf32>
    %223 = vector.extract_strided_slice %220 {offsets = [0, 4], sizes = [8, 4], strides = [1, 1]} : vector<8x8xf32> to vector<8x4xf32>
    %224 = arith.subf %114, %223 : vector<8x4xf32>
    %cst_71 = arith.constant 0.000000e+00 : f32
    %225 = vector.broadcast %cst_71 : f32 to vector<8x4xf32>
    %226 = arith.subf %225, %222 : vector<8x4xf32>
    %227 = math.exp %226 : vector<8x4xf32>
    %228 = arith.mulf %224, %227 : vector<8x4xf32>
    %cst_72 = arith.constant dense<0.000000e+00> : vector<8xf32>
    %229 = vector.multi_reduction <add>, %222, %cst_72 [1] : vector<8x4xf32> to vector<8xf32>
    %230 = vector.shape_cast %229 : vector<8xf32> to vector<8x1xf32>
    %231 = arith.subf %174, %230 : vector<8x1xf32>
    %232 = arith.mulf %228, %228 : vector<8x4xf32>
    %cst_73 = arith.constant dense<0.000000e+00> : vector<8xf32>
    %233 = vector.multi_reduction <add>, %232, %cst_73 [1] : vector<8x4xf32> to vector<8xf32>
    %234 = vector.shape_cast %233 : vector<8xf32> to vector<8x1xf32>
    %235 = arith.mulf %171, %171 : vector<8x4xf32>
    %cst_74 = arith.constant dense<0.000000e+00> : vector<8xf32>
    %236 = vector.multi_reduction <add>, %235, %cst_74 [1] : vector<8x4xf32> to vector<8xf32>
    %237 = vector.shape_cast %236 : vector<8xf32> to vector<8x1xf32>
    %238 = arith.addf %234, %237 : vector<8x1xf32>
    %cst_75 = arith.constant -5.000000e-01 : f32
    %239 = vector.broadcast %cst_75 : f32 to vector<8x1xf32>
    %240 = arith.mulf %239, %238 : vector<8x1xf32>
    %cst_76 = arith.constant 7.35150814 : f32
    %241 = vector.broadcast %cst_76 : f32 to vector<8x1xf32>
    %242 = arith.subf %240, %241 : vector<8x1xf32>
    %243 = arith.addf %242, %231 : vector<8x1xf32>
    %cst_77 = arith.constant 0.000000e+00 : f32
    %244 = vector.broadcast %cst_77 : f32 to vector<8x1xf32>
    %245 = arith.subf %244, %243 : vector<8x1xf32>
    %246 = vector.shape_cast %245 : vector<8x1xf32> to vector<1x8x1xf32>
    %cst_78 = arith.constant dense<0.000000e+00> : vector<1xf32>
    %247 = vector.multi_reduction <add>, %246, %cst_78 [1, 2] : vector<1x8x1xf32> to vector<1xf32>
    %248 = vector.shape_cast %247 : vector<1xf32> to vector<1x1x1xf32>
    %249 = vector.extract %248[0, 0, 0] : f32 from vector<1x1x1xf32>
    %c0_79 = arith.constant 0 : index
    %c0_80 = arith.constant 0 : index
    %250 = memref.load %arg3[%c0_79, %c0_80] : memref<1x1xf32, #tpu.memory_space<smem>>
    memref.store %249, %arg3[%c0_79, %c0_80] : memref<1x1xf32, #tpu.memory_space<smem>>
    return
  }
  func.func @transform_0(%arg0: i32) -> (i32, i32) {
    %c0_i32 = arith.constant 0 : i32
    %c0_i32_0 = arith.constant 0 : i32
    return %arg0, %c0_i32 : i32, i32
  }
  func.func @transform_1(%arg0: i32) -> (i32, i32) {
    %c0_i32 = arith.constant 0 : i32
    %c0_i32_0 = arith.constant 0 : i32
    %c0_i32_1 = arith.constant 0 : i32
    return %c0_i32, %c0_i32_0 : i32, i32
  }
  func.func @transform_2(%arg0: i32) -> (i32, i32) {
    %c0_i32 = arith.constant 0 : i32
    %c0_i32_0 = arith.constant 0 : i32
    return %arg0, %c0_i32 : i32, i32
  }
}

</mosaic_0001>

<llo_original>
// kernel: _realnvp_nll.1
$region0: #{_realnvp_nll.1}
  #allocation0 [shape = 'u32[]', space=smem, size = 0x4, offset = 0x4, fixed_abs, tag = 'smem constant byte address 0x4 - core index']
  #allocation1 [shape = 'u32[144,128]{1,0:T(1,128)}', space=vmem, size = 0x12000, scoped, tag = 'internal scratch']
  %s0 = inlined_call_operand.hbm [shape: f32[8,8], index: 0, kind: input, shape index: {}]
  %s1 = inlined_call_operand.hbm [shape: f32[288,128], index: 1, kind: input, shape index: {}]
  %s2 = inlined_call_operand.hbm [shape: f32[1,1], index: 2, kind: output, shape index: {}]
  %s3 = sld [smem:[#allocation0]]
  $region26: #{_realnvp_nll.1} parent=0
    _
  %s5 = ssub.s32 1, %s3
  %s6 = scalar_select 0, %s5, %s3
  $region1: #{_realnvp_nll.1} parent=0
    #allocation2 [shape = 'u8[4096]{0}', space=vmem, size = 0x1000, scoped, tag = 'input window, operand 0, single buffered']
    #allocation3 [shape = 's32[1]{0}', space=sflag, size = 0x4, scoped, tag = 'scoped memory for _realnvp_nll.1']
    #allocation4 [shape = 's32[1]{0}', space=sflag, size = 0x4, scoped, tag = 'scoped memory for _realnvp_nll.1']
    #allocation5 [shape = 'u8[147456]{0}', space=vmem, size = 0x24000, scoped, tag = 'input window, operand 1, single buffered']
    #allocation6 [shape = 's32[1]{0}', space=sflag, size = 0x4, scoped, tag = 'scoped memory for _realnvp_nll.1']
    #allocation7 [shape = 'u8[512]{0}', space=smem, size = 0x200, scoped, tag = 'output window, operand 0, single buffered']
    %7 = vsyncpa [#allocation3], 0
    %8 = vsyncpa [#allocation6], 0
    %9 = vsyncpa [#allocation4], 0
    // Predicated region
    $region2: #{_realnvp_nll.1} parent=1 // pred_check
      _
    $region3: #{_realnvp_nll.1} parent=1 // pred_check_branch
      %11 = sbr.rel (0) target = $region5
    $region4: #{_realnvp_nll.1} parent=1 // pred_region
      %s13 = ssub.s32 128, 128
      %14 = vsyncadd [#allocation3], %s13
      %s16 = sshll.u32 [#allocation2], 4
      %s17 = int_to_ptr.vmem [resolvable:$true] %s16
      %19 = dma.hbm_to_vmem [thread:$0]  %s0, 128, %s17, [#allocation3]
    $region5: #{_realnvp_nll.1} parent=1 // pred_fallthru
      _
    // Predicated region
    $region6: #{_realnvp_nll.1} parent=1 // pred_check
      _
    $region7: #{_realnvp_nll.1} parent=1 // pred_check_branch
      %21 = sbr.rel (0) target = $region9
    $region8: #{_realnvp_nll.1} parent=1 // pred_region
      %s23 = ssub.s32 4608, 4608
      %24 = vsyncadd [#allocation6], %s23
      %s25 = sshll.u32 [#allocation5], 4
      %s26 = int_to_ptr.vmem [resolvable:$true] %s25
      %31 = dma.hbm_to_vmem [thread:$0]  %s1, 4608, %s26, [#allocation6], 128, 128, 8
    $region9: #{_realnvp_nll.1} parent=1 // pred_fallthru
      _
    // Predicated region
    $region10: #{_realnvp_nll.1} parent=1 // pred_check
      _
    $region11: #{_realnvp_nll.1} parent=1 // pred_check_branch
      %33 = sbr.rel (0) target = $region13
    $region12: #{_realnvp_nll.1} parent=1 // pred_region
      %34 = dma.done [#allocation3], 128
    $region13: #{_realnvp_nll.1} parent=1 // pred_fallthru
      _
    // Predicated region
    $region14: #{_realnvp_nll.1} parent=1 // pred_check
      _
    $region15: #{_realnvp_nll.1} parent=1 // pred_check_branch
      %36 = sbr.rel (0) target = $region17
    $region16: #{_realnvp_nll.1} parent=1 // pred_region
      %37 = dma.done [#allocation6], 4608
    $region17: #{_realnvp_nll.1} parent=1 // pred_fallthru
      _
    %v38 = vld [vmem:[#allocation2] sm:$0xff]
    %v39 = vld [vmem:[#allocation5 + $0x4] sm:$0x1]
    %v40 = vld [vmem:[#allocation5] sm:$0x1]
    %42 = vset.pattern.permute.xlu0 0
    %43 = vperm.xlu0 %42, %v38
    %v44 = vpop.permute.xlu0 %43
    %v46 = vlaneseq
    %v47 = vshrl.u32 %v46, 7
    %v48 = vsub.s32 0, %v47
    %v49 = vrot.slane %v40, %v48
    %v50 = vmul.f32 %v44, %v49
    %v51 = vlaneseq
    %v52 = vshrl.u32 %v51, 7
    %v53 = vsub.s32 0, %v52
    %v54 = vrot.slane %v39, %v53
    %v55 = vadd.f32 %v54, %v50
    %v56 = vld [vmem:[#allocation5 + $0x1] sm:$0x1]
    %57 = vset.pattern.permute.xlu0 1
    %58 = vperm.xlu0 %57, %v38
    %v59 = vpop.permute.xlu0 %58
    %v61 = vlaneseq
    %v62 = vshrl.u32 %v61, 7
    %v63 = vsub.s32 0, %v62
    %v64 = vrot.slane %v56, %v63
    %v65 = vmul.f32 %v59, %v64
    %v66 = vadd.f32 %v55, %v65
    %v67 = vld [vmem:[#allocation5 + $0x2] sm:$0x1]
    %68 = vset.pattern.permute.xlu0 2
    %69 = vperm.xlu0 %68, %v38
    %v70 = vpop.permute.xlu0 %69
    %v72 = vlaneseq
    %v73 = vshrl.u32 %v72, 7
    %v74 = vsub.s32 0, %v73
    %v75 = vrot.slane %v67, %v74
    %v76 = vmul.f32 %v70, %v75
    %v77 = vadd.f32 %v66, %v76
    %v78 = vld [vmem:[#allocation5 + $0x3] sm:$0x1]
    %79 = vset.pattern.permute.xlu0 3
    %80 = vperm.xlu0 %79, %v38
    %v81 = vpop.permute.xlu0 %80
    %v83 = vlaneseq
    %v84 = vshrl.u32 %v83, 7
    %v85 = vsub.s32 0, %v84
    %v86 = vrot.slane %v78, %v85
    %v87 = vmul.f32 %v81, %v86
    %v88 = vadd.f32 %v77, %v87
    %vm89 = vcmp.gt.f32.partialorder %v88, 0.0
    %v90 = vmul.f32 %v88, 0.01
    %v91 = vsel %vm89, %v88, %v90
    %v92 = vld [vmem:[#allocation5 + $0x8] sm:$0xff]
    %v93 = vld [vmem:[#allocation5 + $0x10] sm:$0xff]
    %v94 = vld [vmem:[#allocation5 + $0x18] sm:$0xff]
    %v95 = vld [vmem:[#allocation5 + $0x20] sm:$0xff]
    %v96 = vld [vmem:[#allocation5 + $0x28] sm:$0xff]
    %v97 = vld [vmem:[#allocation5 + $0x30] sm:$0xff]
    %v98 = vld [vmem:[#allocation5 + $0x38] sm:$0xff]
    %v99 = vld [vmem:[#allocation5 + $0x40] sm:$0xff]
    %v100 = vld [vmem:[#allocation5 + $0x5] sm:$0x1]
    %v101 = vlaneseq
    %v102 = vshrl.u32 %v101, 7
    %v103 = vsub.s32 0, %v102
    %v104 = vrot.slane %v100, %v103
    %vm105 = vcmask 523264
    %v107 = vsel %vm105, %v91, 0
    %109 = vmatprep.subr.mxu0 0.0
    %110 = vmatpush1.msra.mxu0 %v92
    %111 = vmatprep.subr.mxu0 0.0
    %112 = vmatpush1.msra.mxu0 %v93
    %113 = vmatprep.subr.mxu0 0.0
    %114 = vmatpush1.msra.mxu0 %v94
    %115 = vmatprep.subr.mxu0 0.0
    %116 = vmatpush1.msra.mxu0 %v95
    %117 = vmatprep.subr.mxu0 0.0
    %118 = vmatpush1.msra.mxu0 %v96
    %119 = vmatprep.subr.mxu0 0.0
    %120 = vmatpush1.msra.mxu0 %v97
    %121 = vmatprep.subr.mxu0 0.0
    %122 = vmatpush1.msra.mxu0 %v98
    %123 = vmatprep.subr.mxu0 0.0
    %124 = vmatpush1.msra.mxu0 %v99
    %125 = vmatprep.subr.mxu0 0.0
    %126 = vmatpush1.msra.mxu0 0.0
    %127 = vmatprep.subr.mxu0 0.0
    %128 = vmatpush1.msra.mxu0 0.0
    %129 = vmatprep.subr.mxu0 0.0
    %130 = vmatpush1.msra.mxu0 0.0
    %131 = vmatprep.subr.mxu0 0.0
    %132 = vmatpush1.msra.mxu0 0.0
    %133 = vmatprep.subr.mxu0 0.0
    %134 = vmatpush1.msra.mxu0 0.0
    %135 = vmatprep.subr.mxu0 0.0
    %136 = vmatpush1.msra.mxu0 0.0
    %137 = vmatprep.subr.mxu0 0.0
    %138 = vmatpush1.msra.mxu0 0.0
    %139 = vmatprep.subr.mxu0 0.0
    %140 = vmatpush1.msra.mxu0 0.0
    %141 = vmatprep.subr.mxu0 0.0
    %142 = vmatpush1.msra.mxu0 0.0
    %143 = vmatprep.subr.mxu0 0.0
    %144 = vmatpush1.msra.mxu0 0.0
    %145 = vmatprep.subr.mxu0 0.0
    %146 = vmatpush1.msra.mxu0 0.0
    %147 = vmatprep.subr.mxu0 0.0
    %148 = vmatpush1.msra.mxu0 0.0
    %149 = vmatprep.subr.mxu0 0.0
    %150 = vmatpush1.msra.mxu0 0.0
    %151 = vmatprep.subr.mxu0 0.0
    %152 = vmatpush1.msra.mxu0 0.0
    %153 = vmatprep.subr.mxu0 0.0
    %154 = vmatpush1.msra.mxu0 0.0
    %155 = vmatprep.subr.mxu0 0.0
    %156 = vmatpush1.msra.mxu0 0.0
    %157 = vmatprep.subr.mxu0 0.0
    %158 = vmatpush1.msra.mxu0 0.0
    %159 = vmatprep.subr.mxu0 0.0
    %160 = vmatpush1.msra.mxu0 0.0
    %161 = vmatprep.subr.mxu0 0.0
    %162 = vmatpush1.msra.mxu0 0.0
    %163 = vmatprep.subr.mxu0 0.0
    %164 = vmatpush1.msra.mxu0 0.0
    %165 = vmatprep.subr.mxu0 0.0
    %166 = vmatpush1.msra.mxu0 0.0
    %167 = vmatprep.subr.mxu0 0.0
    %168 = vmatpush1.msra.mxu0 0.0
    %169 = vmatprep.subr.mxu0 0.0
    %170 = vmatpush1.msra.mxu0 0.0
    %171 = vmatprep.subr.mxu0 0.0
    %172 = vmatpush1.msra.mxu0 0.0
    %173 = vmatprep.mubr.f32.mxu0 0.0
    %174 = vmatmul.mubr.f32.gmra.mrb[0].mxu0 %v107
    %v175 = vpop.f32.mrb[0].mxu0
    %v176 = vadd.f32 %v104, %v175
    %v177 = vpop.f32.mrb[0].mxu0
    %178 = vdwg.mxu0
    %vm179 = vcmp.gt.f32.partialorder %v176, 0.0
    %v180 = vmul.f32 %v176, 0.01
    %v181 = vsel %vm179, %v176, %v180
    %v182 = vld [vmem:[#allocation5 + $0x6] sm:$0x1]
    %v183 = vlaneseq
    %v184 = vshrl.u32 %v183, 7
    %v185 = vsub.s32 0, %v184
    %v186 = vrot.slane %v182, %v185
    %195 = vrot.lane.b32.xlu0 %v92, 64
    %v196 = vpop.permute.xlu0 %195
    %197 = vrot.lane.b32.xlu0 %v93, 64
    %v198 = vpop.permute.xlu0 %197
    %199 = vrot.lane.b32.xlu0 %v94, 64
    %v200 = vpop.permute.xlu0 %199
    %201 = vrot.lane.b32.xlu0 %v95, 64
    %v202 = vpop.permute.xlu0 %201
    %203 = vrot.lane.b32.xlu0 %v96, 64
    %v204 = vpop.permute.xlu0 %203
    %205 = vrot.lane.b32.xlu0 %v97, 64
    %v206 = vpop.permute.xlu0 %205
    %207 = vrot.lane.b32.xlu0 %v98, 64
    %v208 = vpop.permute.xlu0 %207
    %209 = vrot.lane.b32.xlu0 %v99, 64
    %v210 = vpop.permute.xlu0 %209
    %v220 = vsel %vm105, %v181, 0
    %222 = vmatprep.subr.mxu0 0.0
    %223 = vmatpush1.msra.mxu0 %v196
    %224 = vmatprep.subr.mxu0 0.0
    %225 = vmatpush1.msra.mxu0 %v198
    %226 = vmatprep.subr.mxu0 0.0
    %227 = vmatpush1.msra.mxu0 %v200
    %228 = vmatprep.subr.mxu0 0.0
    %229 = vmatpush1.msra.mxu0 %v202
    %230 = vmatprep.subr.mxu0 0.0
    %231 = vmatpush1.msra.mxu0 %v204
    %232 = vmatprep.subr.mxu0 0.0
    %233 = vmatpush1.msra.mxu0 %v206
    %234 = vmatprep.subr.mxu0 0.0
    %235 = vmatpush1.msra.mxu0 %v208
    %236 = vmatprep.subr.mxu0 0.0
    %237 = vmatpush1.msra.mxu0 %v210
    %238 = vmatprep.subr.mxu0 0.0
    %239 = vmatpush1.msra.mxu0 0.0
    %240 = vmatprep.subr.mxu0 0.0
    %241 = vmatpush1.msra.mxu0 0.0
    %242 = vmatprep.subr.mxu0 0.0
    %243 = vmatpush1.msra.mxu0 0.0
    %244 = vmatprep.subr.mxu0 0.0
    %245 = vmatpush1.msra.mxu0 0.0
    %246 = vmatprep.subr.mxu0 0.0
    %247 = vmatpush1.msra.mxu0 0.0
    %248 = vmatprep.subr.mxu0 0.0
    %249 = vmatpush1.msra.mxu0 0.0
    %250 = vmatprep.subr.mxu0 0.0
    %251 = vmatpush1.msra.mxu0 0.0
    %252 = vmatprep.subr.mxu0 0.0
    %253 = vmatpush1.msra.mxu0 0.0
    %254 = vmatprep.subr.mxu0 0.0
    %255 = vmatpush1.msra.mxu0 0.0
    %256 = vmatprep.subr.mxu0 0.0
    %257 = vmatpush1.msra.mxu0 0.0
    %258 = vmatprep.subr.mxu0 0.0
    %259 = vmatpush1.msra.mxu0 0.0
    %260 = vmatprep.subr.mxu0 0.0
    %261 = vmatpush1.msra.mxu0 0.0
    %262 = vmatprep.subr.mxu0 0.0
    %263 = vmatpush1.msra.mxu0 0.0
    %264 = vmatprep.subr.mxu0 0.0
    %265 = vmatpush1.msra.mxu0 0.0
    %266 = vmatprep.subr.mxu0 0.0
    %267 = vmatpush1.msra.mxu0 0.0
    %268 = vmatprep.subr.mxu0 0.0
    %269 = vmatpush1.msra.mxu0 0.0
    %270 = vmatprep.subr.mxu0 0.0
    %271 = vmatpush1.msra.mxu0 0.0
    %272 = vmatprep.subr.mxu0 0.0
    %273 = vmatpush1.msra.mxu0 0.0
    %274 = vmatprep.subr.mxu0 0.0
    %275 = vmatpush1.msra.mxu0 0.0
    %276 = vmatprep.subr.mxu0 0.0
    %277 = vmatpush1.msra.mxu0 0.0
    %278 = vmatprep.subr.mxu0 0.0
    %279 = vmatpush1.msra.mxu0 0.0
    %280 = vmatprep.subr.mxu0 0.0
    %281 = vmatpush1.msra.mxu0 0.0
    %282 = vmatprep.subr.mxu0 0.0
    %283 = vmatpush1.msra.mxu0 0.0
    %284 = vmatprep.subr.mxu0 0.0
    %285 = vmatpush1.msra.mxu0 0.0
    %286 = vmatprep.mubr.f32.mxu0 0.0
    %287 = vmatmul.mubr.f32.gmra.mrb[0].mxu0 %v220
    %v288 = vpop.f32.mrb[0].mxu0
    %v289 = vadd.f32 %v186, %v288
    %v290 = vpop.f32.mrb[0].mxu0
    %291 = vdwg.mxu0
    %v292 = vtanh.pop %v289
    %v293 = vsub.f32 %v38, %v289
    %v294 = vsub.f32 0.0, %v292
    %v295 = vmul.f32 %v294, 1.442695
    %v296 = vpow.pop %v295
    %298 = vrot.lane.b32.xlu0 %v296, 4
    %v299 = vpop.permute.xlu0 %298
    %v301 = vmul.f32 %v293, %v299
    %vm302 = vcmask 31744
    %v303 = vsel %vm302, %v292, 0.0
    %304 = vadd.xlane.f32.xlu0 %v303
    %v305 = vpop.xlane.xlu0 %304
    %v306 = vsub.f32 0.0, %v305
    %v307 = vld [vmem:[#allocation5 + $0x4c] sm:$0x1]
    %v308 = vld [vmem:[#allocation5 + $0x48] sm:$0x1]
    %310 = vset.pattern.permute.xlu0 4
    %311 = vperm.xlu0 %310, %v301
    %v312 = vpop.permute.xlu0 %311
    %v314 = vlaneseq
    %v315 = vshrl.u32 %v314, 7
    %v316 = vsub.s32 0, %v315
    %v317 = vrot.slane %v308, %v316
    %v318 = vmul.f32 %v312, %v317
    %v319 = vlaneseq
    %v320 = vshrl.u32 %v319, 7
    %v321 = vsub.s32 0, %v320
    %v322 = vrot.slane %v307, %v321
    %v323 = vadd.f32 %v322, %v318
    %v324 = vld [vmem:[#allocation5 + $0x49] sm:$0x1]
    %325 = vset.pattern.permute.xlu0 5
    %326 = vperm.xlu0 %325, %v301
    %v327 = vpop.permute.xlu0 %326
    %v329 = vlaneseq
    %v330 = vshrl.u32 %v329, 7
    %v331 = vsub.s32 0, %v330
    %v332 = vrot.slane %v324, %v331
    %v333 = vmul.f32 %v327, %v332
    %v334 = vadd.f32 %v323, %v333
    %v335 = vld [vmem:[#allocation5 + $0x4a] sm:$0x1]
    %336 = vset.pattern.permute.xlu0 6
    %337 = vperm.xlu0 %336, %v301
    %v338 = vpop.permute.xlu0 %337
    %v340 = vlaneseq
    %v341 = vshrl.u32 %v340, 7
    %v342 = vsub.s32 0, %v341
    %v343 = vrot.slane %v335, %v342
    %v344 = vmul.f32 %v338, %v343
    %v345 = vadd.f32 %v334, %v344
    %v346 = vld [vmem:[#allocation5 + $0x4b] sm:$0x1]
    %347 = vset.pattern.permute.xlu0 7
    %348 = vperm.xlu0 %347, %v301
    %v349 = vpop.permute.xlu0 %348
    %v351 = vlaneseq
    %v352 = vshrl.u32 %v351, 7
    %v353 = vsub.s32 0, %v352
    %v354 = vrot.slane %v346, %v353
    %v355 = vmul.f32 %v349, %v354
    %v356 = vadd.f32 %v345, %v355
    %vm357 = vcmp.gt.f32.partialorder %v356, 0.0
    %v358 = vmul.f32 %v356, 0.01
    %v359 = vsel %vm357, %v356, %v358
    %v360 = vld [vmem:[#allocation5 + $0x50] sm:$0xff]
    %v361 = vld [vmem:[#allocation5 + $0x58] sm:$0xff]
    %v362 = vld [vmem:[#allocation5 + $0x60] sm:$0xff]
    %v363 = vld [vmem:[#allocation5 + $0x68] sm:$0xff]
    %v364 = vld [vmem:[#allocation5 + $0x70] sm:$0xff]
    %v365 = vld [vmem:[#allocation5 + $0x78] sm:$0xff]
    %v366 = vld [vmem:[#allocation5 + $0x80] sm:$0xff]
    %v367 = vld [vmem:[#allocation5 + $0x88] sm:$0xff]
    %v368 = vld [vmem:[#allocation5 + $0x4d] sm:$0x1]
    %v369 = vlaneseq
    %v370 = vshrl.u32 %v369, 7
    %v371 = vsub.s32 0, %v370
    %v372 = vrot.slane %v368, %v371
    %v374 = vsel %vm105, %v359, 0
    %376 = vmatprep.subr.mxu0 0.0
    %377 = vmatpush1.msra.mxu0 %v360
    %378 = vmatprep.subr.mxu0 0.0
    %379 = vmatpush1.msra.mxu0 %v361
    %380 = vmatprep.subr.mxu0 0.0
    %381 = vmatpush1.msra.mxu0 %v362
    %382 = vmatprep.subr.mxu0 0.0
    %383 = vmatpush1.msra.mxu0 %v363
    %384 = vmatprep.subr.mxu0 0.0
    %385 = vmatpush1.msra.mxu0 %v364
    %386 = vmatprep.subr.mxu0 0.0
    %387 = vmatpush1.msra.mxu0 %v365
    %388 = vmatprep.subr.mxu0 0.0
    %389 = vmatpush1.msra.mxu0 %v366
    %390 = vmatprep.subr.mxu0 0.0
    %391 = vmatpush1.msra.mxu0 %v367
    %392 = vmatprep.subr.mxu0 0.0
    %393 = vmatpush1.msra.mxu0 0.0
    %394 = vmatprep.subr.mxu0 0.0
    %395 = vmatpush1.msra.mxu0 0.0
    %396 = vmatprep.subr.mxu0 0.0
    %397 = vmatpush1.msra.mxu0 0.0
    %398 = vmatprep.subr.mxu0 0.0
    %399 = vmatpush1.msra.mxu0 0.0
    %400 = vmatprep.subr.mxu0 0.0
    %401 = vmatpush1.msra.mxu0 0.0
    %402 = vmatprep.subr.mxu0 0.0
    %403 = vmatpush1.msra.mxu0 0.0
    %404 = vmatprep.subr.mxu0 0.0
    %405 = vmatpush1.msra.mxu0 0.0
    %406 = vmatprep.subr.mxu0 0.0
    %407 = vmatpush1.msra.mxu0 0.0
    %408 = vmatprep.subr.mxu0 0.0
    %409 = vmatpush1.msra.mxu0 0.0
    %410 = vmatprep.subr.mxu0 0.0
    %411 = vmatpush1.msra.mxu0 0.0
    %412 = vmatprep.subr.mxu0 0.0
    %413 = vmatpush1.msra.mxu0 0.0
    %414 = vmatprep.subr.mxu0 0.0
    %415 = vmatpush1.msra.mxu0 0.0
    %416 = vmatprep.subr.mxu0 0.0
    %417 = vmatpush1.msra.mxu0 0.0
    %418 = vmatprep.subr.mxu0 0.0
    %419 = vmatpush1.msra.mxu0 0.0
    %420 = vmatprep.subr.mxu0 0.0
    %421 = vmatpush1.msra.mxu0 0.0
    %422 = vmatprep.subr.mxu0 0.0
    %423 = vmatpush1.msra.mxu0 0.0
    %424 = vmatprep.subr.mxu0 0.0
    %425 = vmatpush1.msra.mxu0 0.0
    %426 = vmatprep.subr.mxu0 0.0
    %427 = vmatpush1.msra.mxu0 0.0
    %428 = vmatprep.subr.mxu0 0.0
    %429 = vmatpush1.msra.mxu0 0.0
    %430 = vmatprep.subr.mxu0 0.0
    %431 = vmatpush1.msra.mxu0 0.0
    %432 = vmatprep.subr.mxu0 0.0
    %433 = vmatpush1.msra.mxu0 0.0
    %434 = vmatprep.subr.mxu0 0.0
    %435 = vmatpush1.msra.mxu0 0.0
    %436 = vmatprep.subr.mxu0 0.0
    %437 = vmatpush1.msra.mxu0 0.0
    %438 = vmatprep.subr.mxu0 0.0
    %439 = vmatpush1.msra.mxu0 0.0
    %440 = vmatprep.mubr.f32.mxu0 0.0
    %441 = vmatmul.mubr.f32.gmra.mrb[0].mxu0 %v374
    %v442 = vpop.f32.mrb[0].mxu0
    %v443 = vadd.f32 %v372, %v442
    %v444 = vpop.f32.mrb[0].mxu0
    %445 = vdwg.mxu0
    %vm446 = vcmp.gt.f32.partialorder %v443, 0.0
    %v447 = vmul.f32 %v443, 0.01
    %v448 = vsel %vm446, %v443, %v447
    %v449 = vld [vmem:[#allocation5 + $0x4e] sm:$0x1]
    %v450 = vlaneseq
    %v451 = vshrl.u32 %v450, 7
    %v452 = vsub.s32 0, %v451
    %v453 = vrot.slane %v449, %v452
    %462 = vrot.lane.b32.xlu0 %v360, 64
    %v463 = vpop.permute.xlu0 %462
    %464 = vrot.lane.b32.xlu0 %v361, 64
    %v465 = vpop.permute.xlu0 %464
    %466 = vrot.lane.b32.xlu0 %v362, 64
    %v467 = vpop.permute.xlu0 %466
    %468 = vrot.lane.b32.xlu0 %v363, 64
    %v469 = vpop.permute.xlu0 %468
    %470 = vrot.lane.b32.xlu0 %v364, 64
    %v471 = vpop.permute.xlu0 %470
    %472 = vrot.lane.b32.xlu0 %v365, 64
    %v473 = vpop.permute.xlu0 %472
    %474 = vrot.lane.b32.xlu0 %v366, 64
    %v475 = vpop.permute.xlu0 %474
    %476 = vrot.lane.b32.xlu0 %v367, 64
    %v477 = vpop.permute.xlu0 %476
    %v487 = vsel %vm105, %v448, 0
    %489 = vmatprep.subr.mxu0 0.0
    %490 = vmatpush1.msra.mxu0 %v463
    %491 = vmatprep.subr.mxu0 0.0
    %492 = vmatpush1.msra.mxu0 %v465
    %493 = vmatprep.subr.mxu0 0.0
    %494 = vmatpush1.msra.mxu0 %v467
    %495 = vmatprep.subr.mxu0 0.0
    %496 = vmatpush1.msra.mxu0 %v469
    %497 = vmatprep.subr.mxu0 0.0
    %498 = vmatpush1.msra.mxu0 %v471
    %499 = vmatprep.subr.mxu0 0.0
    %500 = vmatpush1.msra.mxu0 %v473
    %501 = vmatprep.subr.mxu0 0.0
    %502 = vmatpush1.msra.mxu0 %v475
    %503 = vmatprep.subr.mxu0 0.0
    %504 = vmatpush1.msra.mxu0 %v477
    %505 = vmatprep.subr.mxu0 0.0
    %506 = vmatpush1.msra.mxu0 0.0
    %507 = vmatprep.subr.mxu0 0.0
    %508 = vmatpush1.msra.mxu0 0.0
    %509 = vmatprep.subr.mxu0 0.0
    %510 = vmatpush1.msra.mxu0 0.0
    %511 = vmatprep.subr.mxu0 0.0
    %512 = vmatpush1.msra.mxu0 0.0
    %513 = vmatprep.subr.mxu0 0.0
    %514 = vmatpush1.msra.mxu0 0.0
    %515 = vmatprep.subr.mxu0 0.0
    %516 = vmatpush1.msra.mxu0 0.0
    %517 = vmatprep.subr.mxu0 0.0
    %518 = vmatpush1.msra.mxu0 0.0
    %519 = vmatprep.subr.mxu0 0.0
    %520 = vmatpush1.msra.mxu0 0.0
    %521 = vmatprep.subr.mxu0 0.0
    %522 = vmatpush1.msra.mxu0 0.0
    %523 = vmatprep.subr.mxu0 0.0
    %524 = vmatpush1.msra.mxu0 0.0
    %525 = vmatprep.subr.mxu0 0.0
    %526 = vmatpush1.msra.mxu0 0.0
    %527 = vmatprep.subr.mxu0 0.0
    %528 = vmatpush1.msra.mxu0 0.0
    %529 = vmatprep.subr.mxu0 0.0
    %530 = vmatpush1.msra.mxu0 0.0
    %531 = vmatprep.subr.mxu0 0.0
    %532 = vmatpush1.msra.mxu0 0.0
    %533 = vmatprep.subr.mxu0 0.0
    %534 = vmatpush1.msra.mxu0 0.0
    %535 = vmatprep.subr.mxu0 0.0
    %536 = vmatpush1.msra.mxu0 0.0
    %537 = vmatprep.subr.mxu0 0.0
    %538 = vmatpush1.msra.mxu0 0.0
    %539 = vmatprep.subr.mxu0 0.0
    %540 = vmatpush1.msra.mxu0 0.0
    %541 = vmatprep.subr.mxu0 0.0
    %542 = vmatpush1.msra.mxu0 0.0
    %543 = vmatprep.subr.mxu0 0.0
    %544 = vmatpush1.msra.mxu0 0.0
    %545 = vmatprep.subr.mxu0 0.0
    %546 = vmatpush1.msra.mxu0 0.0
    %547 = vmatprep.subr.mxu0 0.0
    %548 = vmatpush1.msra.mxu0 0.0
    %549 = vmatprep.subr.mxu0 0.0
    %550 = vmatpush1.msra.mxu0 0.0
    %551 = vmatprep.subr.mxu0 0.0
    %552 = vmatpush1.msra.mxu0 0.0
    %553 = vmatprep.mubr.f32.mxu0 0.0
    %554 = vmatmul.mubr.f32.gmra.mrb[0].mxu0 %v487
    %v555 = vpop.f32.mrb[0].mxu0
    %v556 = vadd.f32 %v453, %v555
    %v557 = vpop.f32.mrb[0].mxu0
    %558 = vdwg.mxu0
    %v559 = vtanh.pop %v556
    %561 = vrot.lane.b32.xlu0 %v556, 124
    %v562 = vpop.permute.xlu0 %561
    %v564 = vsub.f32 %v38, %v562
    %v565 = vsub.f32 0.0, %v559
    %v566 = vmul.f32 %v565, 1.442695
    %v567 = vpow.pop %v566
    %v568 = vmul.f32 %v564, %v567
    %v569 = vsel %vm302, %v559, 0.0
    %570 = vadd.xlane.f32.xlu0 %v569
    %v571 = vpop.xlane.xlu0 %570
    %v572 = vsub.f32 %v306, %v571
    %v573 = vld [vmem:[#allocation5 + $0x94] sm:$0x1]
    %v574 = vld [vmem:[#allocation5 + $0x90] sm:$0x1]
    %576 = vset.pattern.permute.xlu0 0
    %577 = vperm.xlu0 %576, %v568
    %v578 = vpop.permute.xlu0 %577
    %v580 = vlaneseq
    %v581 = vshrl.u32 %v580, 7
    %v582 = vsub.s32 0, %v581
    %v583 = vrot.slane %v574, %v582
    %v584 = vmul.f32 %v578, %v583
    %v585 = vlaneseq
    %v586 = vshrl.u32 %v585, 7
    %v587 = vsub.s32 0, %v586
    %v588 = vrot.slane %v573, %v587
    %v589 = vadd.f32 %v588, %v584
    %v590 = vld [vmem:[#allocation5 + $0x91] sm:$0x1]
    %591 = vset.pattern.permute.xlu0 1
    %592 = vperm.xlu0 %591, %v568
    %v593 = vpop.permute.xlu0 %592
    %v595 = vlaneseq
    %v596 = vshrl.u32 %v595, 7
    %v597 = vsub.s32 0, %v596
    %v598 = vrot.slane %v590, %v597
    %v599 = vmul.f32 %v593, %v598
    %v600 = vadd.f32 %v589, %v599
    %v601 = vld [vmem:[#allocation5 + $0x92] sm:$0x1]
    %602 = vset.pattern.permute.xlu0 2
    %603 = vperm.xlu0 %602, %v568
    %v604 = vpop.permute.xlu0 %603
    %v606 = vlaneseq
    %v607 = vshrl.u32 %v606, 7
    %v608 = vsub.s32 0, %v607
    %v609 = vrot.slane %v601, %v608
    %v610 = vmul.f32 %v604, %v609
    %v611 = vadd.f32 %v600, %v610
    %v612 = vld [vmem:[#allocation5 + $0x93] sm:$0x1]
    %613 = vset.pattern.permute.xlu0 3
    %614 = vperm.xlu0 %613, %v568
    %v615 = vpop.permute.xlu0 %614
    %v617 = vlaneseq
    %v618 = vshrl.u32 %v617, 7
    %v619 = vsub.s32 0, %v618
    %v620 = vrot.slane %v612, %v619
    %v621 = vmul.f32 %v615, %v620
    %v622 = vadd.f32 %v611, %v621
    %vm623 = vcmp.gt.f32.partialorder %v622, 0.0
    %v624 = vmul.f32 %v622, 0.01
    %v625 = vsel %vm623, %v622, %v624
    %v626 = vld [vmem:[#allocation5 + $0x98] sm:$0xff]
    %v627 = vld [vmem:[#allocation5 + $0xa0] sm:$0xff]
    %v628 = vld [vmem:[#allocation5 + $0xa8] sm:$0xff]
    %v629 = vld [vmem:[#allocation5 + $0xb0] sm:$0xff]
    %v630 = vld [vmem:[#allocation5 + $0xb8] sm:$0xff]
    %v631 = vld [vmem:[#allocation5 + $0xc0] sm:$0xff]
    %v632 = vld [vmem:[#allocation5 + $0xc8] sm:$0xff]
    %v633 = vld [vmem:[#allocation5 + $0xd0] sm:$0xff]
    %v634 = vld [vmem:[#allocation5 + $0x95] sm:$0x1]
    %v635 = vlaneseq
    %v636 = vshrl.u32 %v635, 7
    %v637 = vsub.s32 0, %v636
    %v638 = vrot.slane %v634, %v637
    %v640 = vsel %vm105, %v625, 0
    %642 = vmatprep.subr.mxu0 0.0
    %643 = vmatpush1.msra.mxu0 %v626
    %644 = vmatprep.subr.mxu0 0.0
    %645 = vmatpush1.msra.mxu0 %v627
    %646 = vmatprep.subr.mxu0 0.0
    %647 = vmatpush1.msra.mxu0 %v628
    %648 = vmatprep.subr.mxu0 0.0
    %649 = vmatpush1.msra.mxu0 %v629
    %650 = vmatprep.subr.mxu0 0.0
    %651 = vmatpush1.msra.mxu0 %v630
    %652 = vmatprep.subr.mxu0 0.0
    %653 = vmatpush1.msra.mxu0 %v631
    %654 = vmatprep.subr.mxu0 0.0
    %655 = vmatpush1.msra.mxu0 %v632
    %656 = vmatprep.subr.mxu0 0.0
    %657 = vmatpush1.msra.mxu0 %v633
    %658 = vmatprep.subr.mxu0 0.0
    %659 = vmatpush1.msra.mxu0 0.0
    %660 = vmatprep.subr.mxu0 0.0
    %661 = vmatpush1.msra.mxu0 0.0
    %662 = vmatprep.subr.mxu0 0.0
    %663 = vmatpush1.msra.mxu0 0.0
    %664 = vmatprep.subr.mxu0 0.0
    %665 = vmatpush1.msra.mxu0 0.0
    %666 = vmatprep.subr.mxu0 0.0
    %667 = vmatpush1.msra.mxu0 0.0
    %668 = vmatprep.subr.mxu0 0.0
    %669 = vmatpush1.msra.mxu0 0.0
    %670 = vmatprep.subr.mxu0 0.0
    %671 = vmatpush1.msra.mxu0 0.0
    %672 = vmatprep.subr.mxu0 0.0
    %673 = vmatpush1.msra.mxu0 0.0
    %674 = vmatprep.subr.mxu0 0.0
    %675 = vmatpush1.msra.mxu0 0.0
    %676 = vmatprep.subr.mxu0 0.0
    %677 = vmatpush1.msra.mxu0 0.0
    %678 = vmatprep.subr.mxu0 0.0
    %679 = vmatpush1.msra.mxu0 0.0
    %680 = vmatprep.subr.mxu0 0.0
    %681 = vmatpush1.msra.mxu0 0.0
    %682 = vmatprep.subr.mxu0 0.0
    %683 = vmatpush1.msra.mxu0 0.0
    %684 = vmatprep.subr.mxu0 0.0
    %685 = vmatpush1.msra.mxu0 0.0
    %686 = vmatprep.subr.mxu0 0.0
    %687 = vmatpush1.msra.mxu0 0.0
    %688 = vmatprep.subr.mxu0 0.0
    %689 = vmatpush1.msra.mxu0 0.0
    %690 = vmatprep.subr.mxu0 0.0
    %691 = vmatpush1.msra.mxu0 0.0
    %692 = vmatprep.subr.mxu0 0.0
    %693 = vmatpush1.msra.mxu0 0.0
    %694 = vmatprep.subr.mxu0 0.0
    %695 = vmatpush1.msra.mxu0 0.0
    %696 = vmatprep.subr.mxu0 0.0
    %697 = vmatpush1.msra.mxu0 0.0
    %698 = vmatprep.subr.mxu0 0.0
    %699 = vmatpush1.msra.mxu0 0.0
    %700 = vmatprep.subr.mxu0 0.0
    %701 = vmatpush1.msra.mxu0 0.0
    %702 = vmatprep.subr.mxu0 0.0
    %703 = vmatpush1.msra.mxu0 0.0
    %704 = vmatprep.subr.mxu0 0.0
    %705 = vmatpush1.msra.mxu0 0.0
    %706 = vmatprep.mubr.f32.mxu0 0.0
    %707 = vmatmul.mubr.f32.gmra.mrb[0].mxu0 %v640
    %v708 = vpop.f32.mrb[0].mxu0
    %v709 = vadd.f32 %v638, %v708
    %v710 = vpop.f32.mrb[0].mxu0
    %711 = vdwg.mxu0
    %vm712 = vcmp.gt.f32.partialorder %v709, 0.0
    %v713 = vmul.f32 %v709, 0.01
    %v714 = vsel %vm712, %v709, %v713
    %v715 = vld [vmem:[#allocation5 + $0x96] sm:$0x1]
    %v716 = vlaneseq
    %v717 = vshrl.u32 %v716, 7
    %v718 = vsub.s32 0, %v717
    %v719 = vrot.slane %v715, %v718
    %728 = vrot.lane.b32.xlu0 %v626, 64
    %v729 = vpop.permute.xlu0 %728
    %730 = vrot.lane.b32.xlu0 %v627, 64
    %v731 = vpop.permute.xlu0 %730
    %732 = vrot.lane.b32.xlu0 %v628, 64
    %v733 = vpop.permute.xlu0 %732
    %734 = vrot.lane.b32.xlu0 %v629, 64
    %v735 = vpop.permute.xlu0 %734
    %736 = vrot.lane.b32.xlu0 %v630, 64
    %v737 = vpop.permute.xlu0 %736
    %738 = vrot.lane.b32.xlu0 %v631, 64
    %v739 = vpop.permute.xlu0 %738
    %740 = vrot.lane.b32.xlu0 %v632, 64
    %v741 = vpop.permute.xlu0 %740
    %742 = vrot.lane.b32.xlu0 %v633, 64
    %v743 = vpop.permute.xlu0 %742
    %v753 = vsel %vm105, %v714, 0
    %755 = vmatprep.subr.mxu0 0.0
    %756 = vmatpush1.msra.mxu0 %v729
    %757 = vmatprep.subr.mxu0 0.0
    %758 = vmatpush1.msra.mxu0 %v731
    %759 = vmatprep.subr.mxu0 0.0
    %760 = vmatpush1.msra.mxu0 %v733
    %761 = vmatprep.subr.mxu0 0.0
    %762 = vmatpush1.msra.mxu0 %v735
    %763 = vmatprep.subr.mxu0 0.0
    %764 = vmatpush1.msra.mxu0 %v737
    %765 = vmatprep.subr.mxu0 0.0
    %766 = vmatpush1.msra.mxu0 %v739
    %767 = vmatprep.subr.mxu0 0.0
    %768 = vmatpush1.msra.mxu0 %v741
    %769 = vmatprep.subr.mxu0 0.0
    %770 = vmatpush1.msra.mxu0 %v743
    %771 = vmatprep.subr.mxu0 0.0
    %772 = vmatpush1.msra.mxu0 0.0
    %773 = vmatprep.subr.mxu0 0.0
    %774 = vmatpush1.msra.mxu0 0.0
    %775 = vmatprep.subr.mxu0 0.0
    %776 = vmatpush1.msra.mxu0 0.0
    %777 = vmatprep.subr.mxu0 0.0
    %778 = vmatpush1.msra.mxu0 0.0
    %779 = vmatprep.subr.mxu0 0.0
    %780 = vmatpush1.msra.mxu0 0.0
    %781 = vmatprep.subr.mxu0 0.0
    %782 = vmatpush1.msra.mxu0 0.0
    %783 = vmatprep.subr.mxu0 0.0
    %784 = vmatpush1.msra.mxu0 0.0
    %785 = vmatprep.subr.mxu0 0.0
    %786 = vmatpush1.msra.mxu0 0.0
    %787 = vmatprep.subr.mxu0 0.0
    %788 = vmatpush1.msra.mxu0 0.0
    %789 = vmatprep.subr.mxu0 0.0
    %790 = vmatpush1.msra.mxu0 0.0
    %791 = vmatprep.subr.mxu0 0.0
    %792 = vmatpush1.msra.mxu0 0.0
    %793 = vmatprep.subr.mxu0 0.0
    %794 = vmatpush1.msra.mxu0 0.0
    %795 = vmatprep.subr.mxu0 0.0
    %796 = vmatpush1.msra.mxu0 0.0
    %797 = vmatprep.subr.mxu0 0.0
    %798 = vmatpush1.msra.mxu0 0.0
    %799 = vmatprep.subr.mxu0 0.0
    %800 = vmatpush1.msra.mxu0 0.0
    %801 = vmatprep.subr.mxu0 0.0
    %802 = vmatpush1.msra.mxu0 0.0
    %803 = vmatprep.subr.mxu0 0.0
    %804 = vmatpush1.msra.mxu0 0.0
    %805 = vmatprep.subr.mxu0 0.0
    %806 = vmatpush1.msra.mxu0 0.0
    %807 = vmatprep.subr.mxu0 0.0
    %808 = vmatpush1.msra.mxu0 0.0
    %809 = vmatprep.subr.mxu0 0.0
    %810 = vmatpush1.msra.mxu0 0.0
    %811 = vmatprep.subr.mxu0 0.0
    %812 = vmatpush1.msra.mxu0 0.0
    %813 = vmatprep.subr.mxu0 0.0
    %814 = vmatpush1.msra.mxu0 0.0
    %815 = vmatprep.subr.mxu0 0.0
    %816 = vmatpush1.msra.mxu0 0.0
    %817 = vmatprep.subr.mxu0 0.0
    %818 = vmatpush1.msra.mxu0 0.0
    %819 = vmatprep.mubr.f32.mxu0 0.0
    %820 = vmatmul.mubr.f32.gmra.mrb[0].mxu0 %v753
    %v821 = vpop.f32.mrb[0].mxu0
    %v822 = vadd.f32 %v719, %v821
    %v823 = vpop.f32.mrb[0].mxu0
    %824 = vdwg.mxu0
    %v825 = vtanh.pop %v822
    %v826 = vsub.f32 %v301, %v822
    %v827 = vsub.f32 0.0, %v825
    %v828 = vmul.f32 %v827, 1.442695
    %v829 = vpow.pop %v828
    %831 = vrot.lane.b32.xlu0 %v829, 4
    %v832 = vpop.permute.xlu0 %831
    %v834 = vmul.f32 %v826, %v832
    %v835 = vsel %vm302, %v825, 0.0
    %836 = vadd.xlane.f32.xlu0 %v835
    %v837 = vpop.xlane.xlu0 %836
    %v838 = vsub.f32 %v572, %v837
    %v839 = vld [vmem:[#allocation5 + $0xdc] sm:$0x1]
    %v840 = vld [vmem:[#allocation5 + $0xd8] sm:$0x1]
    %842 = vset.pattern.permute.xlu0 4
    %843 = vperm.xlu0 %842, %v834
    %v844 = vpop.permute.xlu0 %843
    %v846 = vlaneseq
    %v847 = vshrl.u32 %v846, 7
    %v848 = vsub.s32 0, %v847
    %v849 = vrot.slane %v840, %v848
    %v850 = vmul.f32 %v844, %v849
    %v851 = vlaneseq
    %v852 = vshrl.u32 %v851, 7
    %v853 = vsub.s32 0, %v852
    %v854 = vrot.slane %v839, %v853
    %v855 = vadd.f32 %v854, %v850
    %v856 = vld [vmem:[#allocation5 + $0xd9] sm:$0x1]
    %857 = vset.pattern.permute.xlu0 5
    %858 = vperm.xlu0 %857, %v834
    %v859 = vpop.permute.xlu0 %858
    %v861 = vlaneseq
    %v862 = vshrl.u32 %v861, 7
    %v863 = vsub.s32 0, %v862
    %v864 = vrot.slane %v856, %v863
    %v865 = vmul.f32 %v859, %v864
    %v866 = vadd.f32 %v855, %v865
    %v867 = vld [vmem:[#allocation5 + $0xda] sm:$0x1]
    %868 = vset.pattern.permute.xlu0 6
    %869 = vperm.xlu0 %868, %v834
    %v870 = vpop.permute.xlu0 %869
    %v872 = vlaneseq
    %v873 = vshrl.u32 %v872, 7
    %v874 = vsub.s32 0, %v873
    %v875 = vrot.slane %v867, %v874
    %v876 = vmul.f32 %v870, %v875
    %v877 = vadd.f32 %v866, %v876
    %v878 = vld [vmem:[#allocation5 + $0xdb] sm:$0x1]
    %879 = vset.pattern.permute.xlu0 7
    %880 = vperm.xlu0 %879, %v834
    %v881 = vpop.permute.xlu0 %880
    %v883 = vlaneseq
    %v884 = vshrl.u32 %v883, 7
    %v885 = vsub.s32 0, %v884
    %v886 = vrot.slane %v878, %v885
    %v887 = vmul.f32 %v881, %v886
    %v888 = vadd.f32 %v877, %v887
    %vm889 = vcmp.gt.f32.partialorder %v888, 0.0
    %v890 = vmul.f32 %v888, 0.01
    %v891 = vsel %vm889, %v888, %v890
    %v892 = vld [vmem:[#allocation5 + $0xe0] sm:$0xff]
    %v893 = vld [vmem:[#allocation5 + $0xe8] sm:$0xff]
    %v894 = vld [vmem:[#allocation5 + $0xf0] sm:$0xff]
    %v895 = vld [vmem:[#allocation5 + $0xf8] sm:$0xff]
    %v896 = vld [vmem:[#allocation5 + $0x100] sm:$0xff]
    %v897 = vld [vmem:[#allocation5 + $0x108] sm:$0xff]
    %v898 = vld [vmem:[#allocation5 + $0x110] sm:$0xff]
    %v899 = vld [vmem:[#allocation5 + $0x118] sm:$0xff]
    %v900 = vld [vmem:[#allocation5 + $0xdd] sm:$0x1]
    %v901 = vlaneseq
    %v902 = vshrl.u32 %v901, 7
    %v903 = vsub.s32 0, %v902
    %v904 = vrot.slane %v900, %v903
    %v906 = vsel %vm105, %v891, 0
    %908 = vmatprep.subr.mxu0 0.0
    %909 = vmatpush1.msra.mxu0 %v892
    %910 = vmatprep.subr.mxu0 0.0
    %911 = vmatpush1.msra.mxu0 %v893
    %912 = vmatprep.subr.mxu0 0.0
    %913 = vmatpush1.msra.mxu0 %v894
    %914 = vmatprep.subr.mxu0 0.0
    %915 = vmatpush1.msra.mxu0 %v895
    %916 = vmatprep.subr.mxu0 0.0
    %917 = vmatpush1.msra.mxu0 %v896
    %918 = vmatprep.subr.mxu0 0.0
    %919 = vmatpush1.msra.mxu0 %v897
    %920 = vmatprep.subr.mxu0 0.0
    %921 = vmatpush1.msra.mxu0 %v898
    %922 = vmatprep.subr.mxu0 0.0
    %923 = vmatpush1.msra.mxu0 %v899
    %924 = vmatprep.subr.mxu0 0.0
    %925 = vmatpush1.msra.mxu0 0.0
    %926 = vmatprep.subr.mxu0 0.0
    %927 = vmatpush1.msra.mxu0 0.0
    %928 = vmatprep.subr.mxu0 0.0
    %929 = vmatpush1.msra.mxu0 0.0
    %930 = vmatprep.subr.mxu0 0.0
    %931 = vmatpush1.msra.mxu0 0.0
    %932 = vmatprep.subr.mxu0 0.0
    %933 = vmatpush1.msra.mxu0 0.0
    %934 = vmatprep.subr.mxu0 0.0
    %935 = vmatpush1.msra.mxu0 0.0
    %936 = vmatprep.subr.mxu0 0.0
    %937 = vmatpush1.msra.mxu0 0.0
    %938 = vmatprep.subr.mxu0 0.0
    %939 = vmatpush1.msra.mxu0 0.0
    %940 = vmatprep.subr.mxu0 0.0
    %941 = vmatpush1.msra.mxu0 0.0
    %942 = vmatprep.subr.mxu0 0.0
    %943 = vmatpush1.msra.mxu0 0.0
    %944 = vmatprep.subr.mxu0 0.0
    %945 = vmatpush1.msra.mxu0 0.0
    %946 = vmatprep.subr.mxu0 0.0
    %947 = vmatpush1.msra.mxu0 0.0
    %948 = vmatprep.subr.mxu0 0.0
    %949 = vmatpush1.msra.mxu0 0.0
    %950 = vmatprep.subr.mxu0 0.0
    %951 = vmatpush1.msra.mxu0 0.0
    %952 = vmatprep.subr.mxu0 0.0
    %953 = vmatpush1.msra.mxu0 0.0
    %954 = vmatprep.subr.mxu0 0.0
    %955 = vmatpush1.msra.mxu0 0.0
    %956 = vmatprep.subr.mxu0 0.0
    %957 = vmatpush1.msra.mxu0 0.0
    %958 = vmatprep.subr.mxu0 0.0
    %959 = vmatpush1.msra.mxu0 0.0
    %960 = vmatprep.subr.mxu0 0.0
    %961 = vmatpush1.msra.mxu0 0.0
    %962 = vmatprep.subr.mxu0 0.0
    %963 = vmatpush1.msra.mxu0 0.0
    %964 = vmatprep.subr.mxu0 0.0
    %965 = vmatpush1.msra.mxu0 0.0
    %966 = vmatprep.subr.mxu0 0.0
    %967 = vmatpush1.msra.mxu0 0.0
    %968 = vmatprep.subr.mxu0 0.0
    %969 = vmatpush1.msra.mxu0 0.0
    %970 = vmatprep.subr.mxu0 0.0
    %971 = vmatpush1.msra.mxu0 0.0
    %972 = vmatprep.mubr.f32.mxu0 0.0
    %973 = vmatmul.mubr.f32.gmra.mrb[0].mxu0 %v906
    %v974 = vpop.f32.mrb[0].mxu0
    %v975 = vadd.f32 %v904, %v974
    %v976 = vpop.f32.mrb[0].mxu0
    %977 = vdwg.mxu0
    %vm978 = vcmp.gt.f32.partialorder %v975, 0.0
    %v979 = vmul.f32 %v975, 0.01
    %v980 = vsel %vm978, %v975, %v979
    %v981 = vld [vmem:[#allocation5 + $0xde] sm:$0x1]
    %v982 = vlaneseq
    %v983 = vshrl.u32 %v982, 7
    %v984 = vsub.s32 0, %v983
    %v985 = vrot.slane %v981, %v984
    %994 = vrot.lane.b32.xlu0 %v892, 64
    %v995 = vpop.permute.xlu0 %994
    %996 = vrot.lane.b32.xlu0 %v893, 64
    %v997 = vpop.permute.xlu0 %996
    %998 = vrot.lane.b32.xlu0 %v894, 64
    %v999 = vpop.permute.xlu0 %998
    %1000 = vrot.lane.b32.xlu0 %v895, 64
    %v1001 = vpop.permute.xlu0 %1000
    %1002 = vrot.lane.b32.xlu0 %v896, 64
    %v1003 = vpop.permute.xlu0 %1002
    %1004 = vrot.lane.b32.xlu0 %v897, 64
    %v1005 = vpop.permute.xlu0 %1004
    %1006 = vrot.lane.b32.xlu0 %v898, 64
    %v1007 = vpop.permute.xlu0 %1006
    %1008 = vrot.lane.b32.xlu0 %v899, 64
    %v1009 = vpop.permute.xlu0 %1008
    %v1019 = vsel %vm105, %v980, 0
    %1021 = vmatprep.subr.mxu0 0.0
    %1022 = vmatpush1.msra.mxu0 %v995
    %1023 = vmatprep.subr.mxu0 0.0
    %1024 = vmatpush1.msra.mxu0 %v997
    %1025 = vmatprep.subr.mxu0 0.0
    %1026 = vmatpush1.msra.mxu0 %v999
    %1027 = vmatprep.subr.mxu0 0.0
    %1028 = vmatpush1.msra.mxu0 %v1001
    %1029 = vmatprep.subr.mxu0 0.0
    %1030 = vmatpush1.msra.mxu0 %v1003
    %1031 = vmatprep.subr.mxu0 0.0
    %1032 = vmatpush1.msra.mxu0 %v1005
    %1033 = vmatprep.subr.mxu0 0.0
    %1034 = vmatpush1.msra.mxu0 %v1007
    %1035 = vmatprep.subr.mxu0 0.0
    %1036 = vmatpush1.msra.mxu0 %v1009
    %1037 = vmatprep.subr.mxu0 0.0
    %1038 = vmatpush1.msra.mxu0 0.0
    %1039 = vmatprep.subr.mxu0 0.0
    %1040 = vmatpush1.msra.mxu0 0.0
    %1041 = vmatprep.subr.mxu0 0.0
    %1042 = vmatpush1.msra.mxu0 0.0
    %1043 = vmatprep.subr.mxu0 0.0
    %1044 = vmatpush1.msra.mxu0 0.0
    %1045 = vmatprep.subr.mxu0 0.0
    %1046 = vmatpush1.msra.mxu0 0.0
    %1047 = vmatprep.subr.mxu0 0.0
    %1048 = vmatpush1.msra.mxu0 0.0
    %1049 = vmatprep.subr.mxu0 0.0
    %1050 = vmatpush1.msra.mxu0 0.0
    %1051 = vmatprep.subr.mxu0 0.0
    %1052 = vmatpush1.msra.mxu0 0.0
    %1053 = vmatprep.subr.mxu0 0.0
    %1054 = vmatpush1.msra.mxu0 0.0
    %1055 = vmatprep.subr.mxu0 0.0
    %1056 = vmatpush1.msra.mxu0 0.0
    %1057 = vmatprep.subr.mxu0 0.0
    %1058 = vmatpush1.msra.mxu0 0.0
    %1059 = vmatprep.subr.mxu0 0.0
    %1060 = vmatpush1.msra.mxu0 0.0
    %1061 = vmatprep.subr.mxu0 0.0
    %1062 = vmatpush1.msra.mxu0 0.0
    %1063 = vmatprep.subr.mxu0 0.0
    %1064 = vmatpush1.msra.mxu0 0.0
    %1065 = vmatprep.subr.mxu0 0.0
    %1066 = vmatpush1.msra.mxu0 0.0
    %1067 = vmatprep.subr.mxu0 0.0
    %1068 = vmatpush1.msra.mxu0 0.0
    %1069 = vmatprep.subr.mxu0 0.0
    %1070 = vmatpush1.msra.mxu0 0.0
    %1071 = vmatprep.subr.mxu0 0.0
    %1072 = vmatpush1.msra.mxu0 0.0
    %1073 = vmatprep.subr.mxu0 0.0
    %1074 = vmatpush1.msra.mxu0 0.0
    %1075 = vmatprep.subr.mxu0 0.0
    %1076 = vmatpush1.msra.mxu0 0.0
    %1077 = vmatprep.subr.mxu0 0.0
    %1078 = vmatpush1.msra.mxu0 0.0
    %1079 = vmatprep.subr.mxu0 0.0
    %1080 = vmatpush1.msra.mxu0 0.0
    %1081 = vmatprep.subr.mxu0 0.0
    %1082 = vmatpush1.msra.mxu0 0.0
    %1083 = vmatprep.subr.mxu0 0.0
    %1084 = vmatpush1.msra.mxu0 0.0
    %1085 = vmatprep.mubr.f32.mxu0 0.0
    %1086 = vmatmul.mubr.f32.gmra.mrb[0].mxu0 %v1019
    %v1087 = vpop.f32.mrb[0].mxu0
    %v1088 = vadd.f32 %v985, %v1087
    %v1089 = vpop.f32.mrb[0].mxu0
    %1090 = vdwg.mxu0
    %v1091 = vtanh.pop %v1088
    %1093 = vrot.lane.b32.xlu0 %v1088, 124
    %v1094 = vpop.permute.xlu0 %1093
    %v1096 = vsub.f32 %v568, %v1094
    %v1097 = vsub.f32 0.0, %v1091
    %v1098 = vmul.f32 %v1097, 1.442695
    %v1099 = vpow.pop %v1098
    %v1100 = vmul.f32 %v1096, %v1099
    %v1101 = vsel %vm302, %v1091, 0.0
    %1102 = vadd.xlane.f32.xlu0 %v1101
    %v1103 = vpop.xlane.xlu0 %1102
    %v1104 = vsub.f32 %v838, %v1103
    %v1105 = vmul.f32 %v1100, %v1100
    %v1106 = vsel %vm302, %v1105, 0.0
    %1107 = vadd.xlane.f32.xlu0 %v1106
    %v1108 = vpop.xlane.xlu0 %1107
    %v1109 = vmul.f32 %v834, %v834
    %1111 = vrot.lane.b32.xlu0 %v1109, 124
    %v1112 = vpop.permute.xlu0 %1111
    %v1114 = vsel %vm302, %v1112, 0.0
    %1115 = vadd.xlane.f32.xlu0 %v1114
    %v1116 = vpop.xlane.xlu0 %1115
    %v1117 = vadd.f32 %v1108, %v1116
    %v1118 = vmul.f32 %v1117, -0.5
    %v1119 = vsub.f32 %v1118, 7.351508
    %v1120 = vadd.f32 %v1119, %v1104
    %v1121 = vsub.f32 0.0, %v1120
    %vm1122 = vcmask 7168
    %v1123 = vsel %vm1122, %v1121, 0.0
    %1124 = vadd.xlane.f32.xlu0 %v1123
    %v1125 = vpop.xlane.xlu0 %1124
    %v1126 = vrot.slane %v1125, 4
    %v1127 = vadd.f32 %v1125, %v1126
    %v1128 = vrot.slane %v1127, 2
    %v1129 = vadd.f32 %v1127, %v1128
    %v1130 = vrot.slane %v1129, 1
    %v1131 = vadd.f32 %v1129, %v1130
    %s1132 = vtos %v1131
    %s1133 = scalar_lea.smem [#allocation7], 0
    %1134 = sst [smem:[%s1133]] %s1132
    // Predicated region
    $region18: #{_realnvp_nll.1} parent=1 // pred_check
      _
    $region19: #{_realnvp_nll.1} parent=1 // pred_check_branch
      %1136 = sbr.rel (0) target = $region21
    $region20: #{_realnvp_nll.1} parent=1 // pred_region
      %s1138 = ssub.s32 16, 16
      %1139 = vsyncadd [#allocation4], %s1138
      %1142 = dma.smem_to_hbm [#allocation7], 16, %s2, [#allocation4]
    $region21: #{_realnvp_nll.1} parent=1 // pred_fallthru
      _
    // Predicated region
    $region22: #{_realnvp_nll.1} parent=1 // pred_check
      _
    $region23: #{_realnvp_nll.1} parent=1 // pred_check_branch
      %1144 = sbr.rel (0) target = $region25
    $region24: #{_realnvp_nll.1} parent=1 // pred_region
      %1145 = dma.done [#allocation4], 16
    $region25: #{_realnvp_nll.1} parent=1 // pred_fallthru
      _
    %1146 = sfence
    %1147 = vsyncpa [#allocation3], 1
    %1148 = vsyncpa [#allocation6], 1
    %1149 = vsyncpa [#allocation4], 1

</llo_original>
